<compile_context>
chip_gen: v5e
topology: v5e:2x2
jax: 0.10.0
libtpu: 0.0.40
codegen_flags: <defaults>
</compile_context>

<pallas_src>
import functools

import jax
import jax.numpy as jnp
from jax import lax
from jax.experimental import pallas as pl
from jax.experimental.pallas import tpu as pltpu


def _crossnet_mix_kernel(x_ref, v_ref, c_ref, u_ref, g_ref, b_ref, out_ref,
                         *, num_layers, low_rank, real_er, compute_dtype):
    """One batch tile, all (pre-packed) weights resident in VMEM.

    x_ref  : (TB, Dp)        input tile
    v_ref  : (L, Dp, ERp)    concatenated V            (column e*R+r = V[l,e,:,r])
    c_ref  : (L, ERp, ERp)   block-diagonal C^T        (block (e,e) = C[l,e]^T)
    u_ref  : (L, ERp, Dp)    stacked U^T               (row    e*R+r = U[l,e,:,r])
    g_ref  : (Dp, ERp)       expanded gating weights   (column e*R+r = G[e,:])
    b_ref  : (L, 1, Dp)      per-layer biases (f32)
    out_ref: (TB, Dp)        output tile
    """
    erp = v_ref.shape[2]

    x0 = x_ref[...].astype(jnp.float32)          # (TB, Dp) f32 residual / x0 path
    x = x0
    g_w = g_ref[...]                             # (Dp, ERp), already compute_dtype

    # If E*R was padded up to a lane multiple, keep padded gating lanes out of
    # the softmax (their V/U columns are zero, so their gate value is unused).
    if erp > real_er:
        lane_valid = lax.broadcasted_iota(jnp.int32, (1, erp), 1) < real_er
    else:
        lane_valid = None

    # num_layers is small & static -> unrolled at trace time.
    for l in range(num_layers):
        x_c = x.astype(compute_dtype)                                    # (TB, Dp)

        # --- gating, lane-dense: expert e's logit replicated over its R lanes.
        logits = jnp.dot(x_c, g_w, preferred_element_type=jnp.float32)   # (TB, ERp)
        if lane_valid is not None:
            logits = jnp.where(lane_valid, logits, -jnp.inf)
        m = jnp.max(logits, axis=-1, keepdims=True)
        p = jnp.exp(logits - m)
        denom = jnp.sum(p, axis=-1, keepdims=True)       # = R * sum_e exp(.)
        gate = p * (float(low_rank) / denom)             # lane e*R+r == softmax gate_e

        # --- fused low-rank expert chain, all E*R lanes at once.
        vx = jnp.tanh(jnp.dot(x_c, v_ref[l],
                              preferred_element_type=jnp.float32))       # (TB, ERp)
        vx = jnp.tanh(jnp.dot(vx.astype(compute_dtype), c_ref[l],
                              preferred_element_type=jnp.float32))       # (TB, ERp)
        vxg = (vx * gate).astype(compute_dtype)          # gate folded into U matmul
        uvx = jnp.dot(vxg, u_ref[l],
                      preferred_element_type=jnp.float32)                # (TB, Dp)

        # softmax weights sum to 1 -> bias applied once per layer.
        x = x + x0 * (uvx + b_ref[l].astype(jnp.float32))

    out_ref[...] = x.astype(out_ref.dtype)


def crossnet_mix(x, U, V, C, G, bias, *, block_b=256,
                 compute_dtype=jnp.bfloat16, interpret=False):
    """CrossNetMix forward.

    x    : (B, D)
    U, V : (L, E, D, R)   per-layer, per-expert low-rank factors
    C    : (L, E, R, R)
    G    : (E, D)         gating nn.Linear(D, 1, bias=False) weights stacked
    bias : (L, D)
    Returns (B, D).
    """
    B, D = x.shape
    L, E, D2, R = U.shape
    assert D2 == D and V.shape == U.shape and C.shape == (L, E, R, R)
    assert G.shape == (E, D) and bias.shape == (L, D)

    ER = E * R
    Dp = pl.cdiv(D, 128) * 128
    ERp = pl.cdiv(ER, 128) * 128

    # Batch tile: fill the MXU M dim, but keep >= 2 grid steps so the
    # "parallel" axis can shard across both v7x TensorCores.
    tb = int(block_b)
    if B <= tb:
        half = (B + 1) // 2
        tb = max(8, ((half + 7) // 8) * 8)
    Bp = ((B + tb - 1) // tb) * tb

    pad_b, pad_d, pad_er = Bp - B, Dp - D, ERp - ER
    xp = jnp.pad(x, ((0, pad_b), (0, pad_d)))

    # --- pre-pack weights (one-time, in the wrapper) -------------------------
    # V: (L,E,D,R) -> (L, Dp, ERp), columns [ V[l,0] | V[l,1] | ... ]
    Vcat = jnp.transpose(V, (0, 2, 1, 3)).reshape(L, D, ER)
    Vcat = jnp.pad(Vcat, ((0, 0), (0, pad_d), (0, pad_er))).astype(compute_dtype)

    # C: block-diagonal (L, ERp, ERp), block (e,e) = C[l,e]^T (row layout v @ C^T)
    Ct = jnp.transpose(C, (0, 1, 3, 2))                    # (L, E, R_in, R_out)
    eyeE = jnp.eye(E, dtype=C.dtype)
    Cblk = (eyeE[None, :, None, :, None] * Ct[:, :, :, None, :]).reshape(L, ER, ER)
    Cblk = jnp.pad(Cblk, ((0, 0), (0, pad_er), (0, pad_er))).astype(compute_dtype)

    # U: (L,E,D,R) -> (L, ERp, Dp), rows stack U[l,e]^T
    Ucat = jnp.transpose(U, (0, 1, 3, 2)).reshape(L, ER, D)
    Ucat = jnp.pad(Ucat, ((0, 0), (0, pad_er), (0, pad_d))).astype(compute_dtype)

    # Gating weights expanded so expert e's logit fills lanes [e*R, (e+1)*R)
    Gexp = jnp.repeat(G, R, axis=0).T                      # (D, E*R)
    Gexp = jnp.pad(Gexp, ((0, pad_d), (0, pad_er))).astype(compute_dtype)

    bf = jnp.pad(bias, ((0, 0), (0, pad_d))).astype(jnp.float32).reshape(L, 1, Dp)

    # --- VMEM budget (weights are double-buffered by default; tiles too) ----
    cdt = jnp.dtype(compute_dtype).itemsize
    x_item = jnp.dtype(x.dtype).itemsize
    weight_bytes = (Vcat.size + Cblk.size + Ucat.size + Gexp.size) * cdt + bf.size * 4
    est = 2 * weight_bytes + 4 * tb * Dp * x_item + 12 * tb * max(Dp, ERp) * 4
    vmem_limit = int(min(64 << 20, max(est, 16 << 20)))

    kernel = functools.partial(_crossnet_mix_kernel,
                               num_layers=L, low_rank=R, real_er=ER,
                               compute_dtype=compute_dtype)

    out = pl.pallas_call(
        kernel,
        out_shape=jax.ShapeDtypeStruct((Bp, Dp), x.dtype),
        grid=(Bp // tb,),
        in_specs=[
            pl.BlockSpec((tb, Dp), lambda i: (i, 0)),            # x: batch-tiled
            pl.BlockSpec((L, Dp, ERp), lambda i: (0, 0, 0)),     # Vcat: resident
            pl.BlockSpec((L, ERp, ERp), lambda i: (0, 0, 0)),    # Cblk: resident
            pl.BlockSpec((L, ERp, Dp), lambda i: (0, 0, 0)),     # Ucat: resident
            pl.BlockSpec((Dp, ERp), lambda i: (0, 0)),           # gating: resident
            pl.BlockSpec((L, 1, Dp), lambda i: (0, 0, 0)),       # bias: resident
        ],
        out_specs=pl.BlockSpec((tb, Dp), lambda i: (i, 0)),
        compiler_params=pltpu.CompilerParams(
            dimension_semantics=("parallel",),
            vmem_limit_bytes=vmem_limit,
        ),
        interpret=interpret,
    )(xp, Vcat, Cblk, Ucat, Gexp, bf)

    return out[:B, :D]


def crossnet_mix_ref(x, U, V, C, G, bias):
    """Pure-JAX reference mirroring the PyTorch CrossNetMix.forward."""
    x0 = x
    xl = x
    L, E = U.shape[0], U.shape[1]
    for l in range(L):
        gate = jax.nn.softmax(xl @ G.T, axis=-1)                 # (B, E)
        moe = jnp.zeros_like(xl)
        for e in range(E):
            vx = jnp.tanh(xl @ V[l, e])                          # (B, R)
            vx = jnp.tanh(vx @ C[l, e].T)                        # (B, R)
            uvx = vx @ U[l, e].T                                 # (B, D)
            dot_e = (uvx + bias[l][None, :]) * x0
            moe = moe + dot_e * gate[:, e:e + 1]
        xl = moe + xl
    return xl


if __name__ == "__main__":
    # batch=256 -> two 128-row "parallel" tiles; in_features=128, low_rank=32,
    # num_experts=4 (E*R = 128, exactly lane-dense), layer_num=2.
    B, D, R, E, L = 256, 128, 32, 4, 2
    key = jax.random.PRNGKey(0)
    kx, ku, kv, kc, kg, kb = jax.random.split(key, 6)

    x = jax.random.normal(kx, (B, D), dtype=jnp.float32)
    U = jax.random.normal(ku, (L, E, D, R), dtype=jnp.float32) * 0.1
    V = jax.random.normal(kv, (L, E, D, R), dtype=jnp.float32) * 0.1
    C = jax.random.normal(kc, (L, E, R, R), dtype=jnp.float32) * 0.1
    G = jax.random.normal(kg, (E, D), dtype=jnp.float32) * 0.1
    bias = jax.random.normal(kb, (L, D), dtype=jnp.float32) * 0.1

    ref = crossnet_mix_ref(x, U, V, C, G, bias)

    # Exact-semantics check with f32 MXU operands (tight tolerance).
    out_f32 = jax.block_until_ready(
        crossnet_mix(x, U, V, C, G, bias, compute_dtype=jnp.float32))
    assert out_f32.shape == (B, D)
    assert jnp.allclose(out_f32, ref, atol=5e-4, rtol=5e-4), "f32 mismatch vs reference"

    # Default fast path: bf16 MXU operands, f32 elementwise/residual path.
    out_bf16 = jax.block_until_ready(crossnet_mix(x, U, V, C, G, bias))
    assert out_bf16.shape == (B, D)
    max_err = float(jnp.max(jnp.abs(out_bf16 - ref)))
    assert max_err < 1e-1, f"bf16 mismatch vs reference (max abs err {max_err})"

    print("KERNEL_OK")
</pallas_src>

<mosaic_0001>
module attributes {stable_mosaic.version = 11 : i64} {
  func.func @_crossnet_mix_kernel(%arg0: i32, %arg1: memref<128x128xf32, #tpu.memory_space<vmem>>, %arg2: memref<2x128x128xf32, #tpu.memory_space<vmem>>, %arg3: memref<2x128x128xf32, #tpu.memory_space<vmem>>, %arg4: memref<2x128x128xf32, #tpu.memory_space<vmem>>, %arg5: memref<128x128xf32, #tpu.memory_space<vmem>>, %arg6: memref<2x1x128xf32, #tpu.memory_space<vmem>>, %arg7: memref<128x128xf32, #tpu.memory_space<vmem>>) attributes {dimension_semantics = [#tpu.dimension_semantics<parallel>], iteration_bounds = array<i64: 2>, scalar_prefetch = 0 : i64, scratch_operands = 0 : i64, tpu.core_type = #tpu.core_type<tc>, window_params = [{transform_indices = @transform_0, window_bounds = array<i64: 128, 128>}, {pipeline_mode = #tpu.pipeline_mode<synchronous>, transform_indices = @transform_1, window_bounds = array<i64: 2, 128, 128>}, {pipeline_mode = #tpu.pipeline_mode<synchronous>, transform_indices = @transform_2, window_bounds = array<i64: 2, 128, 128>}, {pipeline_mode = #tpu.pipeline_mode<synchronous>, transform_indices = @transform_3, window_bounds = array<i64: 2, 128, 128>}, {pipeline_mode = #tpu.pipeline_mode<synchronous>, transform_indices = @transform_4, window_bounds = array<i64: 128, 128>}, {pipeline_mode = #tpu.pipeline_mode<synchronous>, transform_indices = @transform_5, window_bounds = array<i64: 2, 1, 128>}, {transform_indices = @transform_6, window_bounds = array<i64: 128, 128>}]} {
    %c0 = arith.constant 0 : index
    %c0_0 = arith.constant 0 : index
    %0 = vector.load %arg1[%c0, %c0_0] : memref<128x128xf32, #tpu.memory_space<vmem>>, vector<128x128xf32>
    %c0_1 = arith.constant 0 : index
    %c0_2 = arith.constant 0 : index
    %1 = vector.load %arg5[%c0_1, %c0_2] : memref<128x128xf32, #tpu.memory_space<vmem>>, vector<128x128xf32>
    %cst = arith.constant dense<0.000000e+00> : vector<128x128xf32>
    %2 = tpu.matmul %0, %1, %cst {dimension_numbers = #tpu.dot_dimension_numbers<[1], [0], [0], [1], [0, 0, 1, 1], [], []>} : vector<128x128xf32>, vector<128x128xf32>, vector<128x128xf32> -> vector<128x128xf32>
    %cst_3 = arith.constant dense<0xFF800000> : vector<128xf32>
    %3 = vector.multi_reduction <maximumf>, %2, %cst_3 [1] : vector<128x128xf32> to vector<128xf32>
    %4 = vector.shape_cast %3 : vector<128xf32> to vector<128x1xf32>
    %5 = vector.broadcast %4 : vector<128x1xf32> to vector<128x128xf32>
    %6 = arith.subf %2, %5 : vector<128x128xf32>
    %7 = math.exp %6 : vector<128x128xf32>
    %cst_4 = arith.constant dense<0.000000e+00> : vector<128xf32>
    %8 = vector.multi_reduction <add>, %7, %cst_4 [1] : vector<128x128xf32> to vector<128xf32>
    %9 = vector.shape_cast %8 : vector<128xf32> to vector<128x1xf32>
    %cst_5 = arith.constant 3.200000e+01 : f32
    %10 = vector.broadcast %cst_5 : f32 to vector<128x1xf32>
    %11 = arith.divf %10, %9 : vector<128x1xf32>
    %12 = vector.broadcast %11 : vector<128x1xf32> to vector<128x128xf32>
    %13 = arith.mulf %7, %12 : vector<128x128xf32>
    %c0_6 = arith.constant 0 : index
    %c0_7 = arith.constant 0 : index
    %c0_8 = arith.constant 0 : index
    %14 = vector.load %arg2[%c0_6, %c0_7, %c0_8] : memref<2x128x128xf32, #tpu.memory_space<vmem>>, vector<1x128x128xf32>
    %15 = vector.shape_cast %14 : vector<1x128x128xf32> to vector<128x128xf32>
    %cst_9 = arith.constant dense<0.000000e+00> : vector<128x128xf32>
    %16 = tpu.matmul %0, %15, %cst_9 {dimension_numbers = #tpu.dot_dimension_numbers<[1], [0], [0], [1], [0, 0, 1, 1], [], []>} : vector<128x128xf32>, vector<128x128xf32>, vector<128x128xf32> -> vector<128x128xf32>
    %17 = math.tanh %16 : vector<128x128xf32>
    %c0_10 = arith.constant 0 : index
    %c0_11 = arith.constant 0 : index
    %c0_12 = arith.constant 0 : index
    %18 = vector.load %arg3[%c0_10, %c0_11, %c0_12] : memref<2x128x128xf32, #tpu.memory_space<vmem>>, vector<1x128x128xf32>
    %19 = vector.shape_cast %18 : vector<1x128x128xf32> to vector<128x128xf32>
    %cst_13 = arith.constant dense<0.000000e+00> : vector<128x128xf32>
    %20 = tpu.matmul %17, %19, %cst_13 {dimension_numbers = #tpu.dot_dimension_numbers<[1], [0], [0], [1], [0, 0, 1, 1], [], []>} : vector<128x128xf32>, vector<128x128xf32>, vector<128x128xf32> -> vector<128x128xf32>
    %21 = math.tanh %20 : vector<128x128xf32>
    %22 = arith.mulf %21, %13 : vector<128x128xf32>
    %c0_14 = arith.constant 0 : index
    %c0_15 = arith.constant 0 : index
    %c0_16 = arith.constant 0 : index
    %23 = vector.load %arg4[%c0_14, %c0_15, %c0_16] : memref<2x128x128xf32, #tpu.memory_space<vmem>>, vector<1x128x128xf32>
    %24 = vector.shape_cast %23 : vector<1x128x128xf32> to vector<128x128xf32>
    %cst_17 = arith.constant dense<0.000000e+00> : vector<128x128xf32>
    %25 = tpu.matmul %22, %24, %cst_17 {dimension_numbers = #tpu.dot_dimension_numbers<[1], [0], [0], [1], [0, 0, 1, 1], [], []>} : vector<128x128xf32>, vector<128x128xf32>, vector<128x128xf32> -> vector<128x128xf32>
    %c0_18 = arith.constant 0 : index
    %c0_19 = arith.constant 0 : index
    %c0_20 = arith.constant 0 : index
    %26 = vector.load %arg6[%c0_18, %c0_19, %c0_20] : memref<2x1x128xf32, #tpu.memory_space<vmem>>, vector<1x1x128xf32>
    %27 = vector.shape_cast %26 : vector<1x1x128xf32> to vector<1x128xf32>
    %28 = vector.broadcast %27 : vector<1x128xf32> to vector<128x128xf32>
    %29 = arith.addf %25, %28 : vector<128x128xf32>
    %30 = arith.mulf %0, %29 : vector<128x128xf32>
    %31 = arith.addf %0, %30 : vector<128x128xf32>
    %cst_21 = arith.constant dense<0.000000e+00> : vector<128x128xf32>
    %32 = tpu.matmul %31, %1, %cst_21 {dimension_numbers = #tpu.dot_dimension_numbers<[1], [0], [0], [1], [0, 0, 1, 1], [], []>} : vector<128x128xf32>, vector<128x128xf32>, vector<128x128xf32> -> vector<128x128xf32>
    %cst_22 = arith.constant dense<0xFF800000> : vector<128xf32>
    %33 = vector.multi_reduction <maximumf>, %32, %cst_22 [1] : vector<128x128xf32> to vector<128xf32>
    %34 = vector.shape_cast %33 : vector<128xf32> to vector<128x1xf32>
    %35 = vector.broadcast %34 : vector<128x1xf32> to vector<128x128xf32>
    %36 = arith.subf %32, %35 : vector<128x128xf32>
    %37 = math.exp %36 : vector<128x128xf32>
    %cst_23 = arith.constant dense<0.000000e+00> : vector<128xf32>
    %38 = vector.multi_reduction <add>, %37, %cst_23 [1] : vector<128x128xf32> to vector<128xf32>
    %39 = vector.shape_cast %38 : vector<128xf32> to vector<128x1xf32>
    %cst_24 = arith.constant 3.200000e+01 : f32
    %40 = vector.broadcast %cst_24 : f32 to vector<128x1xf32>
    %41 = arith.divf %40, %39 : vector<128x1xf32>
    %42 = vector.broadcast %41 : vector<128x1xf32> to vector<128x128xf32>
    %43 = arith.mulf %37, %42 : vector<128x128xf32>
    %c1 = arith.constant 1 : index
    %c0_25 = arith.constant 0 : index
    %c0_26 = arith.constant 0 : index
    %44 = vector.load %arg2[%c1, %c0_25, %c0_26] : memref<2x128x128xf32, #tpu.memory_space<vmem>>, vector<1x128x128xf32>
    %45 = vector.shape_cast %44 : vector<1x128x128xf32> to vector<128x128xf32>
    %cst_27 = arith.constant dense<0.000000e+00> : vector<128x128xf32>
    %46 = tpu.matmul %31, %45, %cst_27 {dimension_numbers = #tpu.dot_dimension_numbers<[1], [0], [0], [1], [0, 0, 1, 1], [], []>} : vector<128x128xf32>, vector<128x128xf32>, vector<128x128xf32> -> vector<128x128xf32>
    %47 = math.tanh %46 : vector<128x128xf32>
    %c1_28 = arith.constant 1 : index
    %c0_29 = arith.constant 0 : index
    %c0_30 = arith.constant 0 : index
    %48 = vector.load %arg3[%c1_28, %c0_29, %c0_30] : memref<2x128x128xf32, #tpu.memory_space<vmem>>, vector<1x128x128xf32>
    %49 = vector.shape_cast %48 : vector<1x128x128xf32> to vector<128x128xf32>
    %cst_31 = arith.constant dense<0.000000e+00> : vector<128x128xf32>
    %50 = tpu.matmul %47, %49, %cst_31 {dimension_numbers = #tpu.dot_dimension_numbers<[1], [0], [0], [1], [0, 0, 1, 1], [], []>} : vector<128x128xf32>, vector<128x128xf32>, vector<128x128xf32> -> vector<128x128xf32>
    %51 = math.tanh %50 : vector<128x128xf32>
    %52 = arith.mulf %51, %43 : vector<128x128xf32>
    %c1_32 = arith.constant 1 : index
    %c0_33 = arith.constant 0 : index
    %c0_34 = arith.constant 0 : index
    %53 = vector.load %arg4[%c1_32, %c0_33, %c0_34] : memref<2x128x128xf32, #tpu.memory_space<vmem>>, vector<1x128x128xf32>
    %54 = vector.shape_cast %53 : vector<1x128x128xf32> to vector<128x128xf32>
    %cst_35 = arith.constant dense<0.000000e+00> : vector<128x128xf32>
    %55 = tpu.matmul %52, %54, %cst_35 {dimension_numbers = #tpu.dot_dimension_numbers<[1], [0], [0], [1], [0, 0, 1, 1], [], []>} : vector<128x128xf32>, vector<128x128xf32>, vector<128x128xf32> -> vector<128x128xf32>
    %c1_36 = arith.constant 1 : index
    %c0_37 = arith.constant 0 : index
    %c0_38 = arith.constant 0 : index
    %56 = vector.load %arg6[%c1_36, %c0_37, %c0_38] : memref<2x1x128xf32, #tpu.memory_space<vmem>>, vector<1x1x128xf32>
    %57 = vector.shape_cast %56 : vector<1x1x128xf32> to vector<1x128xf32>
    %58 = vector.broadcast %57 : vector<1x128xf32> to vector<128x128xf32>
    %59 = arith.addf %55, %58 : vector<128x128xf32>
    %60 = arith.mulf %0, %59 : vector<128x128xf32>
    %61 = arith.addf %31, %60 : vector<128x128xf32>
    %c0_39 = arith.constant 0 : index
    %c0_40 = arith.constant 0 : index
    %62 = vector.load %arg7[%c0_39, %c0_40] : memref<128x128xf32, #tpu.memory_space<vmem>>, vector<128x128xf32>
    tpu.vector_store %arg7[%c0_39, %c0_40], %61 {strides = array<i32>} : memref<128x128xf32, #tpu.memory_space<vmem>>, vector<128x128xf32>,
    return
  }
  func.func @transform_0(%arg0: i32) -> (i32, i32) {
    %c0_i32 = arith.constant 0 : i32
    %c0_i32_0 = arith.constant 0 : i32
    return %arg0, %c0_i32 : i32, i32
  }
  func.func @transform_1(%arg0: i32) -> (i32, i32, i32) {
    %c0_i32 = arith.constant 0 : i32
    %c0_i32_0 = arith.constant 0 : i32
    %c0_i32_1 = arith.constant 0 : i32
    %c0_i32_2 = arith.constant 0 : i32
    return %c0_i32, %c0_i32_0, %c0_i32_1 : i32, i32, i32
  }
  func.func @transform_2(%arg0: i32) -> (i32, i32, i32) {
    %c0_i32 = arith.constant 0 : i32
    %c0_i32_0 = arith.constant 0 : i32
    %c0_i32_1 = arith.constant 0 : i32
    %c0_i32_2 = arith.constant 0 : i32
    return %c0_i32, %c0_i32_0, %c0_i32_1 : i32, i32, i32
  }
  func.func @transform_3(%arg0: i32) -> (i32, i32, i32) {
    %c0_i32 = arith.constant 0 : i32
    %c0_i32_0 = arith.constant 0 : i32
    %c0_i32_1 = arith.constant 0 : i32
    %c0_i32_2 = arith.constant 0 : i32
    return %c0_i32, %c0_i32_0, %c0_i32_1 : i32, i32, i32
  }
  func.func @transform_4(%arg0: i32) -> (i32, i32) {
    %c0_i32 = arith.constant 0 : i32
    %c0_i32_0 = arith.constant 0 : i32
    %c0_i32_1 = arith.constant 0 : i32
    return %c0_i32, %c0_i32_0 : i32, i32
  }
  func.func @transform_5(%arg0: i32) -> (i32, i32, i32) {
    %c0_i32 = arith.constant 0 : i32
    %c0_i32_0 = arith.constant 0 : i32
    %c0_i32_1 = arith.constant 0 : i32
    %c0_i32_2 = arith.constant 0 : i32
    return %c0_i32, %c0_i32_0, %c0_i32_1 : i32, i32, i32
  }
  func.func @transform_6(%arg0: i32) -> (i32, i32) {
    %c0_i32 = arith.constant 0 : i32
    %c0_i32_0 = arith.constant 0 : i32
    return %arg0, %c0_i32 : i32, i32
  }
}

</mosaic_0001>

<llo_original>
// kernel: tpu_custom_call.1
$region0: #{tpu_custom_call.1}
  #allocation0 [shape = 'u32[]', space=smem, size = 0x4, offset = 0x4, fixed_abs, tag = 'smem constant byte address 0x4 - core index']
  #allocation1 [shape = 'u32[72,128]{1,0:T(1,128)}', space=vmem, size = 0x9000, scoped, tag = 'internal scratch']
  %s0 = inlined_call_operand.hbm [shape: f32[256,128], index: 0, kind: input, shape index: {}]
  %s1 = inlined_call_operand.hbm [shape: f32[2,128,128], index: 1, kind: input, shape index: {}]
  %s2 = inlined_call_operand.hbm [shape: f32[2,128,128], index: 2, kind: input, shape index: {}]
  %s3 = inlined_call_operand.hbm [shape: f32[2,128,128], index: 3, kind: input, shape index: {}]
  %s4 = inlined_call_operand.hbm [shape: f32[128,128], index: 4, kind: input, shape index: {}]
  %s5 = inlined_call_operand.vmem [shape: f32[2,1,128], index: 5, kind: input, shape index: {}]
  %s6 = inlined_call_operand.hbm [shape: f32[256,128], index: 6, kind: output, shape index: {}]
  %s7 = sld [smem:[#allocation0]]
  $region77: #{tpu_custom_call.1} parent=0
    _
  %s9 = ssub.s32 1, %s7
  %s10 = scalar_select 0, %s9, %s7
  $region1: #{tpu_custom_call.1} parent=0
    #allocation2 [shape = 'u8[131072]{0}', space=vmem, size = 0x20000, scoped, tag = 'input window, operand 0']
    #allocation3 [shape = 's32[2]{0}', space=sflag, size = 0x8, scoped, tag = 'scoped memory for tpu_custom_call.1']
    #allocation4 [shape = 's32[2]{0}', space=sflag, size = 0x8, scoped, tag = 'scoped memory for tpu_custom_call.1']
    #allocation5 [shape = 'u8[131072]{0}', space=vmem, size = 0x20000, scoped, tag = 'input window, operand 1, single buffered']
    #allocation6 [shape = 's32[1]{0}', space=sflag, size = 0x4, scoped, tag = 'scoped memory for tpu_custom_call.1']
    #allocation7 [shape = 'u8[131072]{0}', space=vmem, size = 0x20000, scoped, tag = 'input window, operand 2, single buffered']
    #allocation8 [shape = 'u8[131072]{0}', space=vmem, size = 0x20000, scoped, tag = 'input window, operand 3, single buffered']
    #allocation9 [shape = 's32[1]{0}', space=sflag, size = 0x4, scoped, tag = 'scoped memory for tpu_custom_call.1']
    #allocation10 [shape = 'u8[65536]{0}', space=vmem, size = 0x10000, scoped, tag = 'input window, operand 4, single buffered']
    #allocation11 [shape = 'u8[131072]{0}', space=vmem, size = 0x20000, scoped, tag = 'output window, operand 0']
    %11 = vsyncpa [#allocation3], 0
    %s12 = scalar_lea.sflag [#allocation3], 1
    %13 = vsyncpa %s12, 0
    %14 = vsyncpa [#allocation6], 0
    %15 = vsyncpa [#allocation9], 0
    %16 = vsyncpa [#allocation4], 0
    %s17 = scalar_lea.sflag [#allocation4], 1
    %18 = vsyncpa %s17, 0
    loop: start=0, step=1, limit=4
    $region2: #{tpu_custom_call.1} parent=1 // loop_pre_header
      _
    $region3: #{tpu_custom_call.1} parent=1 // loop_header
      %s20 = sphi 0, %s24
      %p21 = scmp.ge.s32.totalorder %s20, 4
      %s30 = sphi 0, %s32
      %s33 = sphi 0, %s30
      %s34 = sphi 0, %s33
      %s50 = sphi 0, %s34
      %s54 = sphi 0, %s54
      %s56 = sphi 0, %s54
      %s57 = sphi 0, %s56
      %s71 = sphi 0, %s57
      %s75 = sphi 0, %s75
      %s77 = sphi 0, %s75
      %s78 = sphi 0, %s77
      %s92 = sphi 0, %s78
      %s96 = sphi 0, %s96
      %s98 = sphi 0, %s96
      %s99 = sphi 0, %s98
      %s113 = sphi 0, %s99
      %s117 = sphi 0, %s117
      %s119 = sphi 0, %s117
      %s120 = sphi 0, %s119
      %s134 = sphi 0, %s120
      %s138 = sphi 0, %s138
      %s140 = sphi 0, %s138
      %s141 = sphi 0, %s140
      %s155 = sphi 0, %s141
      %s161 = sphi 0, %s163
      %s164 = sphi 0, %s161
      %s165 = sphi 0, %s164
      %s181 = sphi 0, %s165
    $region4: #{tpu_custom_call.1} parent=1 // loop_header_branch
      %23 = sbr.rel (%p21) target = $region8
    $region5: #{tpu_custom_call.1} parent=1 // loop_body
      %s25 = ssub.s32 %s20, 1
      %s26 = ssub.s32 %s20, 2
      %s27 = sadd.s32 %s20, 1
      %s28 = ssub.s32 %s20, %s27
      %p29 = scmp.eq.s32.totalorder %s28, 0
      %s31 = sadd.s32 %s30, 1
      %s32 = scalar_select %p29, %s30, %s31
      %p35 = pneg %p29
      %p36 = scmp.eq.s32.totalorder %s20, 1
      %p37 = por %p35, %p36
      %p38 = scmp.ne.s32.totalorder %s30, %s33
      %p39 = scmp.eq.s32.totalorder %s20, 0
      %p40 = por %p38, %p39
      %p41 = scmp.ne.s32.totalorder %s30, %s33
      %p42 = scmp.eq.s32.totalorder %s25, 1
      %p43 = por %p41, %p42
      %p44 = scmp.ne.s32.totalorder %s33, %s34
      %p45 = scmp.eq.s32.totalorder %s25, 0
      %p46 = por %p44, %p45
      %p47 = scmp.ne.s32.totalorder %s33, %s34
      %p48 = scmp.eq.s32.totalorder %s26, 1
      %p49 = por %p47, %p48
      %p51 = scmp.ne.s32.totalorder %s34, %s50
      %p52 = scmp.eq.s32.totalorder %s26, 0
      %p53 = por %p51, %p52
      %s55 = sadd.s32 %s54, 1
      %p58 = scmp.eq.s32.totalorder %s20, 1
      %p59 = scmp.ne.s32.totalorder %s54, %s56
      %p60 = scmp.eq.s32.totalorder %s20, 0
      %p61 = por %p59, %p60
      %p62 = scmp.ne.s32.totalorder %s54, %s56
      %p63 = scmp.eq.s32.totalorder %s25, 1
      %p64 = por %p62, %p63
      %p65 = scmp.ne.s32.totalorder %s56, %s57
      %p66 = scmp.eq.s32.totalorder %s25, 0
      %p67 = por %p65, %p66
      %p68 = scmp.ne.s32.totalorder %s56, %s57
      %p69 = scmp.eq.s32.totalorder %s26, 1
      %p70 = por %p68, %p69
      %p72 = scmp.ne.s32.totalorder %s57, %s71
      %p73 = scmp.eq.s32.totalorder %s26, 0
      %p74 = por %p72, %p73
      %s76 = sadd.s32 %s75, 1
      %p79 = scmp.eq.s32.totalorder %s20, 1
      %p80 = scmp.ne.s32.totalorder %s75, %s77
      %p81 = scmp.eq.s32.totalorder %s20, 0
      %p82 = por %p80, %p81
      %p83 = scmp.ne.s32.totalorder %s75, %s77
      %p84 = scmp.eq.s32.totalorder %s25, 1
      %p85 = por %p83, %p84
      %p86 = scmp.ne.s32.totalorder %s77, %s78
      %p87 = scmp.eq.s32.totalorder %s25, 0
      %p88 = por %p86, %p87
      %p89 = scmp.ne.s32.totalorder %s77, %s78
      %p90 = scmp.eq.s32.totalorder %s26, 1
      %p91 = por %p89, %p90
      %p93 = scmp.ne.s32.totalorder %s78, %s92
      %p94 = scmp.eq.s32.totalorder %s26, 0
      %p95 = por %p93, %p94
      %s97 = sadd.s32 %s96, 1
      %p100 = scmp.eq.s32.totalorder %s20, 1
      %p101 = scmp.ne.s32.totalorder %s96, %s98
      %p102 = scmp.eq.s32.totalorder %s20, 0
      %p103 = por %p101, %p102
      %p104 = scmp.ne.s32.totalorder %s96, %s98
      %p105 = scmp.eq.s32.totalorder %s25, 1
      %p106 = por %p104, %p105
      %p107 = scmp.ne.s32.totalorder %s98, %s99
      %p108 = scmp.eq.s32.totalorder %s25, 0
      %p109 = por %p107, %p108
      %p110 = scmp.ne.s32.totalorder %s98, %s99
      %p111 = scmp.eq.s32.totalorder %s26, 1
      %p112 = por %p110, %p111
      %p114 = scmp.ne.s32.totalorder %s99, %s113
      %p115 = scmp.eq.s32.totalorder %s26, 0
      %p116 = por %p114, %p115
      %s118 = sadd.s32 %s117, 1
      %p121 = scmp.eq.s32.totalorder %s20, 1
      %p122 = scmp.ne.s32.totalorder %s117, %s119
      %p123 = scmp.eq.s32.totalorder %s20, 0
      %p124 = por %p122, %p123
      %p125 = scmp.ne.s32.totalorder %s117, %s119
      %p126 = scmp.eq.s32.totalorder %s25, 1
      %p127 = por %p125, %p126
      %p128 = scmp.ne.s32.totalorder %s119, %s120
      %p129 = scmp.eq.s32.totalorder %s25, 0
      %p130 = por %p128, %p129
      %p131 = scmp.ne.s32.totalorder %s119, %s120
      %p132 = scmp.eq.s32.totalorder %s26, 1
      %p133 = por %p131, %p132
      %p135 = scmp.ne.s32.totalorder %s120, %s134
      %p136 = scmp.eq.s32.totalorder %s26, 0
      %p137 = por %p135, %p136
      %s139 = sadd.s32 %s138, 1
      %p142 = scmp.eq.s32.totalorder %s20, 1
      %p143 = scmp.ne.s32.totalorder %s138, %s140
      %p144 = scmp.eq.s32.totalorder %s20, 0
      %p145 = por %p143, %p144
      %p146 = scmp.ne.s32.totalorder %s138, %s140
      %p147 = scmp.eq.s32.totalorder %s25, 1
      %p148 = por %p146, %p147
      %p149 = scmp.ne.s32.totalorder %s140, %s141
      %p150 = scmp.eq.s32.totalorder %s25, 0
      %p151 = por %p149, %p150
      %p152 = scmp.ne.s32.totalorder %s140, %s141
      %p153 = scmp.eq.s32.totalorder %s26, 1
      %p154 = por %p152, %p153
      %p156 = scmp.ne.s32.totalorder %s141, %s155
      %p157 = scmp.eq.s32.totalorder %s26, 0
      %p158 = por %p156, %p157
      %s159 = ssub.s32 %s20, %s27
      %p160 = scmp.eq.s32.totalorder %s159, 0
      %s162 = sadd.s32 %s161, 1
      %s163 = scalar_select %p160, %s161, %s162
      %p166 = pneg %p160
      %p167 = scmp.eq.s32.totalorder %s20, 1
      %p168 = por %p166, %p167
      %p169 = scmp.ne.s32.totalorder %s161, %s164
      %p170 = scmp.eq.s32.totalorder %s20, 0
      %p171 = por %p169, %p170
      %p172 = scmp.ne.s32.totalorder %s161, %s164
      %p173 = scmp.eq.s32.totalorder %s25, 1
      %p174 = por %p172, %p173
      %p175 = scmp.ne.s32.totalorder %s164, %s165
      %p176 = scmp.eq.s32.totalorder %s25, 0
      %p177 = por %p175, %p176
      %p178 = scmp.ne.s32.totalorder %s164, %s165
      %p179 = scmp.eq.s32.totalorder %s26, 1
      %p180 = por %p178, %p179
      %p182 = scmp.ne.s32.totalorder %s165, %s181
      %p183 = scmp.eq.s32.totalorder %s26, 0
      %p184 = por %p182, %p183
      %p185 = scmp.le.s32.totalorder 1, %s20
      %p186 = scmp.lt.s32.totalorder %s20, 3
      %p187 = pnand %p185, %p186
      %p188 = pneg %p187
      // Predicated region
      $region9: #{tpu_custom_call.1} parent=5 // pred_check
        _
      $region10: #{tpu_custom_call.1} parent=5 // pred_check_branch
        %190 = sbr.rel (%p187) target = $region12
      $region11: #{tpu_custom_call.1} parent=5 // pred_region
        %s191 = ssub.s32 %s20, 1
        // Predicated region
        $region13: #{tpu_custom_call.1} parent=11 // pred_check
          %p192 = pneg %p67
        $region14: #{tpu_custom_call.1} parent=11 // pred_check_branch
          %194 = sbr.rel (%p192) target = $region16
        $region15: #{tpu_custom_call.1} parent=11 // pred_region
          %196 = vsyncadd [#allocation6], 0
          %s197 = sshll.u32 %s1, 4
          %s198 = int_to_ptr.hbm [resolvable:$true] %s197
          %s199 = sshll.u32 [#allocation5], 4
          %s200 = int_to_ptr.vmem [resolvable:$true] %s199
          %205 = dma.hbm_to_vmem [thread:$0]  %s198, 4096, %s200, [#allocation6], 128, 128, 8
        $region16: #{tpu_custom_call.1} parent=11 // pred_fallthru
          _
        // Predicated region
        $region17: #{tpu_custom_call.1} parent=11 // pred_check
          %p206 = pneg %p88
        $region18: #{tpu_custom_call.1} parent=11 // pred_check_branch
          %208 = sbr.rel (%p206) target = $region20
        $region19: #{tpu_custom_call.1} parent=11 // pred_region
          %210 = vsyncadd [#allocation6], 0
          %s211 = sshll.u32 %s2, 4
          %s212 = int_to_ptr.hbm [resolvable:$true] %s211
          %s213 = sshll.u32 [#allocation7], 4
          %s214 = int_to_ptr.vmem [resolvable:$true] %s213
          %219 = dma.hbm_to_vmem [thread:$0]  %s212, 4096, %s214, [#allocation6], 128, 128, 8
        $region20: #{tpu_custom_call.1} parent=11 // pred_fallthru
          _
        // Predicated region
        $region21: #{tpu_custom_call.1} parent=11 // pred_check
          %p220 = pneg %p109
        $region22: #{tpu_custom_call.1} parent=11 // pred_check_branch
          %222 = sbr.rel (%p220) target = $region24
        $region23: #{tpu_custom_call.1} parent=11 // pred_region
          %224 = vsyncadd [#allocation9], 0
          %s225 = sshll.u32 %s3, 4
          %s226 = int_to_ptr.hbm [resolvable:$true] %s225
          %s227 = sshll.u32 [#allocation8], 4
          %s228 = int_to_ptr.vmem [resolvable:$true] %s227
          %233 = dma.hbm_to_vmem [thread:$0]  %s226, 4096, %s228, [#allocation9], 128, 128, 8
        $region24: #{tpu_custom_call.1} parent=11 // pred_fallthru
          _
        // Predicated region
        $region25: #{tpu_custom_call.1} parent=11 // pred_check
          %p234 = pneg %p130
        $region26: #{tpu_custom_call.1} parent=11 // pred_check_branch
          %236 = sbr.rel (%p234) target = $region28
        $region27: #{tpu_custom_call.1} parent=11 // pred_region
          %238 = vsyncadd [#allocation9], 0
          %s239 = sshll.u32 %s4, 4
          %s240 = int_to_ptr.hbm [resolvable:$true] %s239
          %s241 = sshll.u32 [#allocation10], 4
          %s242 = int_to_ptr.vmem [resolvable:$true] %s241
          %247 = dma.hbm_to_vmem [thread:$0]  %s240, 2048, %s242, [#allocation9], 128, 128, 8
        $region28: #{tpu_custom_call.1} parent=11 // pred_fallthru
          _
        // Predicated region
        $region29: #{tpu_custom_call.1} parent=11 // pred_check
          %p248 = pneg %p151
        $region30: #{tpu_custom_call.1} parent=11 // pred_check_branch
          %250 = sbr.rel (%p248) target = $region32
        $region31: #{tpu_custom_call.1} parent=11 // pred_region
          _
        $region32: #{tpu_custom_call.1} parent=11 // pred_fallthru
          _
      $region12: #{tpu_custom_call.1} parent=5 // pred_fallthru
        _
      %p251 = scmp.lt.s32.totalorder %s20, 2
      // Predicated region
      $region33: #{tpu_custom_call.1} parent=5 // pred_check
        %p252 = pneg %p251
      $region34: #{tpu_custom_call.1} parent=5 // pred_check_branch
        %254 = sbr.rel (%p252) target = $region36
      $region35: #{tpu_custom_call.1} parent=5 // pred_region
        // Predicated region
        $region37: #{tpu_custom_call.1} parent=35 // pred_check
          %p255 = pneg %p40
        $region38: #{tpu_custom_call.1} parent=35 // pred_check_branch
          %257 = sbr.rel (%p255) target = $region40
        $region39: #{tpu_custom_call.1} parent=35 // pred_region
          %s258 = sand.u32 %s30, 1
          %s259 = scalar_lea.sflag [#allocation3], %s258
          %s260 = sand.u32 %s30, 1
          %s261 = smul.addr %s260, 128
          %s262 = scalar_lea.vmem [#allocation2], %s261
          %s263 = smul.u32 16, %s20
          %265 = vsyncadd %s259, 0
          %s266 = smul.addr %s263, 8
          %s267 = scalar_lea.hbm %s0, %s266
          %s268 = sshll.u32 %s267, 4
          %s269 = int_to_ptr.hbm [resolvable:$true] %s268
          %s270 = sshll.u32 %s262, 4
          %s271 = int_to_ptr.vmem [resolvable:$true] %s270
          %276 = dma.hbm_to_vmem [thread:$0]  %s269, 2048, %s271, %s259, 128, 128, 8
        $region40: #{tpu_custom_call.1} parent=35 // pred_fallthru
          _
      $region36: #{tpu_custom_call.1} parent=5 // pred_fallthru
        _
      %p277 = scmp.le.s32.totalorder 1, %s20
      %p278 = scmp.lt.s32.totalorder %s20, 3
      %p279 = pnand %p277, %p278
      %p280 = pneg %p279
      // Predicated region
      $region41: #{tpu_custom_call.1} parent=5 // pred_check
        _
      $region42: #{tpu_custom_call.1} parent=5 // pred_check_branch
        %282 = sbr.rel (%p279) target = $region44
      $region43: #{tpu_custom_call.1} parent=5 // pred_region
        %s283 = ssub.s32 %s20, 1
        %s284 = sand.u32 %s33, 1
        %s285 = scalar_lea.sflag [#allocation3], %s284
        %s286 = sand.u32 %s33, 1
        %s287 = smul.addr %s286, 128
        %s288 = scalar_lea.vmem [#allocation2], %s287
        // Predicated region
        $region45: #{tpu_custom_call.1} parent=43 // pred_check
          %p289 = pneg %p46
        $region46: #{tpu_custom_call.1} parent=43 // pred_check_branch
          %291 = sbr.rel (%p289) target = $region48
        $region47: #{tpu_custom_call.1} parent=43 // pred_region
          %293 = dma.done %s285, 2048
        $region48: #{tpu_custom_call.1} parent=43 // pred_fallthru
          _
        // Predicated region
        $region49: #{tpu_custom_call.1} parent=43 // pred_check
          %p294 = pneg %p67
        $region50: #{tpu_custom_call.1} parent=43 // pred_check_branch
          %296 = sbr.rel (%p294) target = $region52
        $region51: #{tpu_custom_call.1} parent=43 // pred_region
          %298 = dma.done [#allocation6], 4096
        $region52: #{tpu_custom_call.1} parent=43 // pred_fallthru
          _
        // Predicated region
        $region53: #{tpu_custom_call.1} parent=43 // pred_check
          %p299 = pneg %p88
        $region54: #{tpu_custom_call.1} parent=43 // pred_check_branch
          %301 = sbr.rel (%p299) target = $region56
        $region55: #{tpu_custom_call.1} parent=43 // pred_region
          %303 = dma.done [#allocation6], 4096
        $region56: #{tpu_custom_call.1} parent=43 // pred_fallthru
          _
        // Predicated region
        $region57: #{tpu_custom_call.1} parent=43 // pred_check
          %p304 = pneg %p109
        $region58: #{tpu_custom_call.1} parent=43 // pred_check_branch
          %306 = sbr.rel (%p304) target = $region60
        $region59: #{tpu_custom_call.1} parent=43 // pred_region
          %308 = dma.done [#allocation9], 4096
        $region60: #{tpu_custom_call.1} parent=43 // pred_fallthru
          _
        // Predicated region
        $region61: #{tpu_custom_call.1} parent=43 // pred_check
          %p309 = pneg %p130
        $region62: #{tpu_custom_call.1} parent=43 // pred_check_branch
          %311 = sbr.rel (%p309) target = $region64
        $region63: #{tpu_custom_call.1} parent=43 // pred_region
          %313 = dma.done [#allocation9], 2048
        $region64: #{tpu_custom_call.1} parent=43 // pred_fallthru
          _
        %s314 = sand.u32 %s33, 1
        %s315 = scalar_lea.sflag [#allocation3], %s314
        %s316 = sand.u32 %s33, 1
        %s317 = smul.addr %s316, 128
        %s318 = scalar_lea.vmem [#allocation2], %s317
        %p319 = pneg %p46
        %p320 = pneg %p43
        %p321 = pneg %p67
        %p322 = pneg %p64
        %p323 = pneg %p88
        %p324 = pneg %p85
        %p325 = pneg %p109
        %p326 = pneg %p106
        %p327 = pneg %p130
        %p328 = pneg %p127
        %p329 = pneg %p151
        %p330 = pneg %p148
        %p331 = pneg %p177
        %p332 = pneg %p174
        %s333 = sand.u32 %s164, 1
        %s334 = scalar_lea.sflag [#allocation4], %s333
        %s335 = sand.u32 %s164, 1
        %s336 = smul.addr %s335, 128
        %s337 = scalar_lea.vmem [#allocation11], %s336
        %s338 = smul.u32 16, %s25
        %s339 = smul.u32 16, %s25
        %v340 = vld [vmem:[%s288] sm:$0xff]
        %v341 = vld [vmem:[%s288 + $0x8] sm:$0xff]
        %v342 = vld [vmem:[%s288 + $0x10] sm:$0xff]
        %v343 = vld [vmem:[%s288 + $0x18] sm:$0xff]
        %v344 = vld [vmem:[%s288 + $0x20] sm:$0xff]
        %v345 = vld [vmem:[%s288 + $0x28] sm:$0xff]
        %v346 = vld [vmem:[%s288 + $0x30] sm:$0xff]
        %v347 = vld [vmem:[%s288 + $0x38] sm:$0xff]
        %v348 = vld [vmem:[%s288 + $0x40] sm:$0xff]
        %v349 = vld [vmem:[%s288 + $0x48] sm:$0xff]
        %v350 = vld [vmem:[%s288 + $0x50] sm:$0xff]
        %v351 = vld [vmem:[%s288 + $0x58] sm:$0xff]
        %v352 = vld [vmem:[%s288 + $0x60] sm:$0xff]
        %v353 = vld [vmem:[%s288 + $0x68] sm:$0xff]
        %v354 = vld [vmem:[%s288 + $0x70] sm:$0xff]
        %v355 = vld [vmem:[%s288 + $0x78] sm:$0xff]
        %v356 = vld [vmem:[#allocation10] sm:$0xff]
        %v357 = vld [vmem:[#allocation10 + $0x8] sm:$0xff]
        %v358 = vld [vmem:[#allocation10 + $0x10] sm:$0xff]
        %v359 = vld [vmem:[#allocation10 + $0x18] sm:$0xff]
        %v360 = vld [vmem:[#allocation10 + $0x20] sm:$0xff]
        %v361 = vld [vmem:[#allocation10 + $0x28] sm:$0xff]
        %v362 = vld [vmem:[#allocation10 + $0x30] sm:$0xff]
        %v363 = vld [vmem:[#allocation10 + $0x38] sm:$0xff]
        %v364 = vld [vmem:[#allocation10 + $0x40] sm:$0xff]
        %v365 = vld [vmem:[#allocation10 + $0x48] sm:$0xff]
        %v366 = vld [vmem:[#allocation10 + $0x50] sm:$0xff]
        %v367 = vld [vmem:[#allocation10 + $0x58] sm:$0xff]
        %v368 = vld [vmem:[#allocation10 + $0x60] sm:$0xff]
        %v369 = vld [vmem:[#allocation10 + $0x68] sm:$0xff]
        %v370 = vld [vmem:[#allocation10 + $0x70] sm:$0xff]
        %v371 = vld [vmem:[#allocation10 + $0x78] sm:$0xff]
        %372 = vmatpush.msra.mxu0 %v371
        %373 = vmatpush.msra.mxu0 %v370
        %374 = vmatpush.msra.mxu0 %v369
        %375 = vmatpush.msra.mxu0 %v368
        %376 = vmatpush.msra.mxu0 %v367
        %377 = vmatpush.msra.mxu0 %v366
        %378 = vmatpush.msra.mxu0 %v365
        %379 = vmatpush.msra.mxu0 %v364
        %380 = vmatpush.msra.mxu0 %v363
        %381 = vmatpush.msra.mxu0 %v362
        %382 = vmatpush.msra.mxu0 %v361
        %383 = vmatpush.msra.mxu0 %v360
        %384 = vmatpush.msra.mxu0 %v359
        %385 = vmatpush.msra.mxu0 %v358
        %386 = vmatpush.msra.mxu0 %v357
        %387 = vmatpush.msra.mxu0 %v356
        %388 = vmatmul.f32.gmra.mxu0 %v340
        %v389 = vpop.f32.mrf.mxu0
        %v390 = vadd.f32 0.0, %v389
        %391 = vmatmul.f32.gmra.mxu0 %v341
        %v392 = vpop.f32.mrf.mxu0
        %v393 = vadd.f32 0.0, %v392
        %394 = vmatmul.f32.gmra.mxu0 %v342
        %v395 = vpop.f32.mrf.mxu0
        %v396 = vadd.f32 0.0, %v395
        %397 = vmatmul.f32.gmra.mxu0 %v343
        %v398 = vpop.f32.mrf.mxu0
        %v399 = vadd.f32 0.0, %v398
        %400 = vmatmul.f32.gmra.mxu0 %v344
        %v401 = vpop.f32.mrf.mxu0
        %v402 = vadd.f32 0.0, %v401
        %403 = vmatmul.f32.gmra.mxu0 %v345
        %v404 = vpop.f32.mrf.mxu0
        %v405 = vadd.f32 0.0, %v404
        %406 = vmatmul.f32.gmra.mxu0 %v346
        %v407 = vpop.f32.mrf.mxu0
        %v408 = vadd.f32 0.0, %v407
        %409 = vmatmul.f32.gmra.mxu0 %v347
        %v410 = vpop.f32.mrf.mxu0
        %v411 = vadd.f32 0.0, %v410
        %412 = vmatmul.f32.gmra.mxu0 %v348
        %v413 = vpop.f32.mrf.mxu0
        %v414 = vadd.f32 0.0, %v413
        %415 = vmatmul.f32.gmra.mxu0 %v349
        %v416 = vpop.f32.mrf.mxu0
        %v417 = vadd.f32 0.0, %v416
        %418 = vmatmul.f32.gmra.mxu0 %v350
        %v419 = vpop.f32.mrf.mxu0
        %v420 = vadd.f32 0.0, %v419
        %421 = vmatmul.f32.gmra.mxu0 %v351
        %v422 = vpop.f32.mrf.mxu0
        %v423 = vadd.f32 0.0, %v422
        %424 = vmatmul.f32.gmra.mxu0 %v352
        %v425 = vpop.f32.mrf.mxu0
        %v426 = vadd.f32 0.0, %v425
        %427 = vmatmul.f32.gmra.mxu0 %v353
        %v428 = vpop.f32.mrf.mxu0
        %v429 = vadd.f32 0.0, %v428
        %430 = vmatmul.f32.gmra.mxu0 %v354
        %v431 = vpop.f32.mrf.mxu0
        %v432 = vadd.f32 0.0, %v431
        %433 = vmatmul.f32.gmra.mxu0 %v355
        %v434 = vpop.f32.mrf.mxu0
        %v435 = vadd.f32 0.0, %v434
        %436 = vdwg.mxu0
        %437 = vmax.xlane.f32.xlu0 %v390
        %v438 = vpop.xlane.xlu0 %437
        %439 = vmax.xlane.f32.xlu0 %v393
        %v440 = vpop.xlane.xlu0 %439
        %441 = vmax.xlane.f32.xlu0 %v396
        %v442 = vpop.xlane.xlu0 %441
        %443 = vmax.xlane.f32.xlu0 %v399
        %v444 = vpop.xlane.xlu0 %443
        %445 = vmax.xlane.f32.xlu0 %v402
        %v446 = vpop.xlane.xlu0 %445
        %447 = vmax.xlane.f32.xlu0 %v405
        %v448 = vpop.xlane.xlu0 %447
        %449 = vmax.xlane.f32.xlu0 %v408
        %v450 = vpop.xlane.xlu0 %449
        %451 = vmax.xlane.f32.xlu0 %v411
        %v452 = vpop.xlane.xlu0 %451
        %453 = vmax.xlane.f32.xlu0 %v414
        %v454 = vpop.xlane.xlu0 %453
        %455 = vmax.xlane.f32.xlu0 %v417
        %v456 = vpop.xlane.xlu0 %455
        %457 = vmax.xlane.f32.xlu0 %v420
        %v458 = vpop.xlane.xlu0 %457
        %459 = vmax.xlane.f32.xlu0 %v423
        %v460 = vpop.xlane.xlu0 %459
        %461 = vmax.xlane.f32.xlu0 %v426
        %v462 = vpop.xlane.xlu0 %461
        %463 = vmax.xlane.f32.xlu0 %v429
        %v464 = vpop.xlane.xlu0 %463
        %465 = vmax.xlane.f32.xlu0 %v432
        %v466 = vpop.xlane.xlu0 %465
        %467 = vmax.xlane.f32.xlu0 %v435
        %v468 = vpop.xlane.xlu0 %467
        %v469 = vsub.f32 %v390, %v438
        %v470 = vsub.f32 %v393, %v440
        %v471 = vsub.f32 %v396, %v442
        %v472 = vsub.f32 %v399, %v444
        %v473 = vsub.f32 %v402, %v446
        %v474 = vsub.f32 %v405, %v448
        %v475 = vsub.f32 %v408, %v450
        %v476 = vsub.f32 %v411, %v452
        %v477 = vsub.f32 %v414, %v454
        %v478 = vsub.f32 %v417, %v456
        %v479 = vsub.f32 %v420, %v458
        %v480 = vsub.f32 %v423, %v460
        %v481 = vsub.f32 %v426, %v462
        %v482 = vsub.f32 %v429, %v464
        %v483 = vsub.f32 %v432, %v466
        %v484 = vsub.f32 %v435, %v468
        %v485 = vmul.f32 %v469, 1.442695
        %v486 = vpow.pop %v485
        %v487 = vmul.f32 %v470, 1.442695
        %v488 = vpow.pop %v487
        %v489 = vmul.f32 %v471, 1.442695
        %v490 = vpow.pop %v489
        %v491 = vmul.f32 %v472, 1.442695
        %v492 = vpow.pop %v491
        %v493 = vmul.f32 %v473, 1.442695
        %v494 = vpow.pop %v493
        %v495 = vmul.f32 %v474, 1.442695
        %v496 = vpow.pop %v495
        %v497 = vmul.f32 %v475, 1.442695
        %v498 = vpow.pop %v497
        %v499 = vmul.f32 %v476, 1.442695
        %v500 = vpow.pop %v499
        %v501 = vmul.f32 %v477, 1.442695
        %v502 = vpow.pop %v501
        %v503 = vmul.f32 %v478, 1.442695
        %v504 = vpow.pop %v503
        %v505 = vmul.f32 %v479, 1.442695
        %v506 = vpow.pop %v505
        %v507 = vmul.f32 %v480, 1.442695
        %v508 = vpow.pop %v507
        %v509 = vmul.f32 %v481, 1.442695
        %v510 = vpow.pop %v509
        %v511 = vmul.f32 %v482, 1.442695
        %v512 = vpow.pop %v511
        %v513 = vmul.f32 %v483, 1.442695
        %v514 = vpow.pop %v513
        %v515 = vmul.f32 %v484, 1.442695
        %v516 = vpow.pop %v515
        %517 = vadd.xlane.f32.xlu0 %v486
        %v518 = vpop.xlane.xlu0 %517
        %519 = vadd.xlane.f32.xlu0 %v488
        %v520 = vpop.xlane.xlu0 %519
        %521 = vadd.xlane.f32.xlu0 %v490
        %v522 = vpop.xlane.xlu0 %521
        %523 = vadd.xlane.f32.xlu0 %v492
        %v524 = vpop.xlane.xlu0 %523
        %525 = vadd.xlane.f32.xlu0 %v494
        %v526 = vpop.xlane.xlu0 %525
        %527 = vadd.xlane.f32.xlu0 %v496
        %v528 = vpop.xlane.xlu0 %527
        %529 = vadd.xlane.f32.xlu0 %v498
        %v530 = vpop.xlane.xlu0 %529
        %531 = vadd.xlane.f32.xlu0 %v500
        %v532 = vpop.xlane.xlu0 %531
        %533 = vadd.xlane.f32.xlu0 %v502
        %v534 = vpop.xlane.xlu0 %533
        %535 = vadd.xlane.f32.xlu0 %v504
        %v536 = vpop.xlane.xlu0 %535
        %537 = vadd.xlane.f32.xlu0 %v506
        %v538 = vpop.xlane.xlu0 %537
        %539 = vadd.xlane.f32.xlu0 %v508
        %v540 = vpop.xlane.xlu0 %539
        %541 = vadd.xlane.f32.xlu0 %v510
        %v542 = vpop.xlane.xlu0 %541
        %543 = vadd.xlane.f32.xlu0 %v512
        %v544 = vpop.xlane.xlu0 %543
        %545 = vadd.xlane.f32.xlu0 %v514
        %v546 = vpop.xlane.xlu0 %545
        %547 = vadd.xlane.f32.xlu0 %v516
        %v548 = vpop.xlane.xlu0 %547
        %v549 = vrcp.pop %v518
        %v550 = vmul.f32 %v518, %v549
        %v551 = vsub.f32 1.0, %v550
        %v552 = vmul.f32 %v549, %v551
        %v553 = vadd.f32 %v549, %v552
        %vm554 = vweird.f32 %v518
        %vm555 = vweird.f32 %v549
        %vm556 = vmor %vm554, %vm555
        %v557 = vsel %vm556, %v549, %v553
        %v558 = vand.u32 2147483647, %v518
        %vm559 = vcmp.eq.f32.partialorder %v558, 8.507059e+37
        %v560 = vand.u32 %v518, 2147483648
        %v561 = vor.u32 1.1754944e-38, %v560
        %v562 = vsel %vm559, %v561, %v557
        %v563 = vmul.f32 32.0, %v562
        %v564 = vrcp.pop %v520
        %v565 = vmul.f32 %v520, %v564
        %v566 = vsub.f32 1.0, %v565
        %v567 = vmul.f32 %v564, %v566
        %v568 = vadd.f32 %v564, %v567
        %vm569 = vweird.f32 %v520
        %vm570 = vweird.f32 %v564
        %vm571 = vmor %vm569, %vm570
        %v572 = vsel %vm571, %v564, %v568
        %v573 = vand.u32 2147483647, %v520
        %vm574 = vcmp.eq.f32.partialorder %v573, 8.507059e+37
        %v575 = vand.u32 %v520, 2147483648
        %v576 = vor.u32 1.1754944e-38, %v575
        %v577 = vsel %vm574, %v576, %v572
        %v578 = vmul.f32 32.0, %v577
        %v579 = vrcp.pop %v522
        %v580 = vmul.f32 %v522, %v579
        %v581 = vsub.f32 1.0, %v580
        %v582 = vmul.f32 %v579, %v581
        %v583 = vadd.f32 %v579, %v582
        %vm584 = vweird.f32 %v522
        %vm585 = vweird.f32 %v579
        %vm586 = vmor %vm584, %vm585
        %v587 = vsel %vm586, %v579, %v583
        %v588 = vand.u32 2147483647, %v522
        %vm589 = vcmp.eq.f32.partialorder %v588, 8.507059e+37
        %v590 = vand.u32 %v522, 2147483648
        %v591 = vor.u32 1.1754944e-38, %v590
        %v592 = vsel %vm589, %v591, %v587
        %v593 = vmul.f32 32.0, %v592
        %v594 = vrcp.pop %v524
        %v595 = vmul.f32 %v524, %v594
        %v596 = vsub.f32 1.0, %v595
        %v597 = vmul.f32 %v594, %v596
        %v598 = vadd.f32 %v594, %v597
        %vm599 = vweird.f32 %v524
        %vm600 = vweird.f32 %v594
        %vm601 = vmor %vm599, %vm600
        %v602 = vsel %vm601, %v594, %v598
        %v603 = vand.u32 2147483647, %v524
        %vm604 = vcmp.eq.f32.partialorder %v603, 8.507059e+37
        %v605 = vand.u32 %v524, 2147483648
        %v606 = vor.u32 1.1754944e-38, %v605
        %v607 = vsel %vm604, %v606, %v602
        %v608 = vmul.f32 32.0, %v607
        %v609 = vrcp.pop %v526
        %v610 = vmul.f32 %v526, %v609
        %v611 = vsub.f32 1.0, %v610
        %v612 = vmul.f32 %v609, %v611
        %v613 = vadd.f32 %v609, %v612
        %vm614 = vweird.f32 %v526
        %vm615 = vweird.f32 %v609
        %vm616 = vmor %vm614, %vm615
        %v617 = vsel %vm616, %v609, %v613
        %v618 = vand.u32 2147483647, %v526
        %vm619 = vcmp.eq.f32.partialorder %v618, 8.507059e+37
        %v620 = vand.u32 %v526, 2147483648
        %v621 = vor.u32 1.1754944e-38, %v620
        %v622 = vsel %vm619, %v621, %v617
        %v623 = vmul.f32 32.0, %v622
        %v624 = vrcp.pop %v528
        %v625 = vmul.f32 %v528, %v624
        %v626 = vsub.f32 1.0, %v625
        %v627 = vmul.f32 %v624, %v626
        %v628 = vadd.f32 %v624, %v627
        %vm629 = vweird.f32 %v528
        %vm630 = vweird.f32 %v624
        %vm631 = vmor %vm629, %vm630
        %v632 = vsel %vm631, %v624, %v628
        %v633 = vand.u32 2147483647, %v528
        %vm634 = vcmp.eq.f32.partialorder %v633, 8.507059e+37
        %v635 = vand.u32 %v528, 2147483648
        %v636 = vor.u32 1.1754944e-38, %v635
        %v637 = vsel %vm634, %v636, %v632
        %v638 = vmul.f32 32.0, %v637
        %v639 = vrcp.pop %v530
        %v640 = vmul.f32 %v530, %v639
        %v641 = vsub.f32 1.0, %v640
        %v642 = vmul.f32 %v639, %v641
        %v643 = vadd.f32 %v639, %v642
        %vm644 = vweird.f32 %v530
        %vm645 = vweird.f32 %v639
        %vm646 = vmor %vm644, %vm645
        %v647 = vsel %vm646, %v639, %v643
        %v648 = vand.u32 2147483647, %v530
        %vm649 = vcmp.eq.f32.partialorder %v648, 8.507059e+37
        %v650 = vand.u32 %v530, 2147483648
        %v651 = vor.u32 1.1754944e-38, %v650
        %v652 = vsel %vm649, %v651, %v647
        %v653 = vmul.f32 32.0, %v652
        %v654 = vrcp.pop %v532
        %v655 = vmul.f32 %v532, %v654
        %v656 = vsub.f32 1.0, %v655
        %v657 = vmul.f32 %v654, %v656
        %v658 = vadd.f32 %v654, %v657
        %vm659 = vweird.f32 %v532
        %vm660 = vweird.f32 %v654
        %vm661 = vmor %vm659, %vm660
        %v662 = vsel %vm661, %v654, %v658
        %v663 = vand.u32 2147483647, %v532
        %vm664 = vcmp.eq.f32.partialorder %v663, 8.507059e+37
        %v665 = vand.u32 %v532, 2147483648
        %v666 = vor.u32 1.1754944e-38, %v665
        %v667 = vsel %vm664, %v666, %v662
        %v668 = vmul.f32 32.0, %v667
        %v669 = vrcp.pop %v534
        %v670 = vmul.f32 %v534, %v669
        %v671 = vsub.f32 1.0, %v670
        %v672 = vmul.f32 %v669, %v671
        %v673 = vadd.f32 %v669, %v672
        %vm674 = vweird.f32 %v534
        %vm675 = vweird.f32 %v669
        %vm676 = vmor %vm674, %vm675
        %v677 = vsel %vm676, %v669, %v673
        %v678 = vand.u32 2147483647, %v534
        %vm679 = vcmp.eq.f32.partialorder %v678, 8.507059e+37
        %v680 = vand.u32 %v534, 2147483648
        %v681 = vor.u32 1.1754944e-38, %v680
        %v682 = vsel %vm679, %v681, %v677
        %v683 = vmul.f32 32.0, %v682
        %v684 = vrcp.pop %v536
        %v685 = vmul.f32 %v536, %v684
        %v686 = vsub.f32 1.0, %v685
        %v687 = vmul.f32 %v684, %v686
        %v688 = vadd.f32 %v684, %v687
        %vm689 = vweird.f32 %v536
        %vm690 = vweird.f32 %v684
        %vm691 = vmor %vm689, %vm690
        %v692 = vsel %vm691, %v684, %v688
        %v693 = vand.u32 2147483647, %v536
        %vm694 = vcmp.eq.f32.partialorder %v693, 8.507059e+37
        %v695 = vand.u32 %v536, 2147483648
        %v696 = vor.u32 1.1754944e-38, %v695
        %v697 = vsel %vm694, %v696, %v692
        %v698 = vmul.f32 32.0, %v697
        %v699 = vrcp.pop %v538
        %v700 = vmul.f32 %v538, %v699
        %v701 = vsub.f32 1.0, %v700
        %v702 = vmul.f32 %v699, %v701
        %v703 = vadd.f32 %v699, %v702
        %vm704 = vweird.f32 %v538
        %vm705 = vweird.f32 %v699
        %vm706 = vmor %vm704, %vm705
        %v707 = vsel %vm706, %v699, %v703
        %v708 = vand.u32 2147483647, %v538
        %vm709 = vcmp.eq.f32.partialorder %v708, 8.507059e+37
        %v710 = vand.u32 %v538, 2147483648
        %v711 = vor.u32 1.1754944e-38, %v710
        %v712 = vsel %vm709, %v711, %v707
        %v713 = vmul.f32 32.0, %v712
        %v714 = vrcp.pop %v540
        %v715 = vmul.f32 %v540, %v714
        %v716 = vsub.f32 1.0, %v715
        %v717 = vmul.f32 %v714, %v716
        %v718 = vadd.f32 %v714, %v717
        %vm719 = vweird.f32 %v540
        %vm720 = vweird.f32 %v714
        %vm721 = vmor %vm719, %vm720
        %v722 = vsel %vm721, %v714, %v718
        %v723 = vand.u32 2147483647, %v540
        %vm724 = vcmp.eq.f32.partialorder %v723, 8.507059e+37
        %v725 = vand.u32 %v540, 2147483648
        %v726 = vor.u32 1.1754944e-38, %v725
        %v727 = vsel %vm724, %v726, %v722
        %v728 = vmul.f32 32.0, %v727
        %v729 = vrcp.pop %v542
        %v730 = vmul.f32 %v542, %v729
        %v731 = vsub.f32 1.0, %v730
        %v732 = vmul.f32 %v729, %v731
        %v733 = vadd.f32 %v729, %v732
        %vm734 = vweird.f32 %v542
        %vm735 = vweird.f32 %v729
        %vm736 = vmor %vm734, %vm735
        %v737 = vsel %vm736, %v729, %v733
        %v738 = vand.u32 2147483647, %v542
        %vm739 = vcmp.eq.f32.partialorder %v738, 8.507059e+37
        %v740 = vand.u32 %v542, 2147483648
        %v741 = vor.u32 1.1754944e-38, %v740
        %v742 = vsel %vm739, %v741, %v737
        %v743 = vmul.f32 32.0, %v742
        %v744 = vrcp.pop %v544
        %v745 = vmul.f32 %v544, %v744
        %v746 = vsub.f32 1.0, %v745
        %v747 = vmul.f32 %v744, %v746
        %v748 = vadd.f32 %v744, %v747
        %vm749 = vweird.f32 %v544
        %vm750 = vweird.f32 %v744
        %vm751 = vmor %vm749, %vm750
        %v752 = vsel %vm751, %v744, %v748
        %v753 = vand.u32 2147483647, %v544
        %vm754 = vcmp.eq.f32.partialorder %v753, 8.507059e+37
        %v755 = vand.u32 %v544, 2147483648
        %v756 = vor.u32 1.1754944e-38, %v755
        %v757 = vsel %vm754, %v756, %v752
        %v758 = vmul.f32 32.0, %v757
        %v759 = vrcp.pop %v546
        %v760 = vmul.f32 %v546, %v759
        %v761 = vsub.f32 1.0, %v760
        %v762 = vmul.f32 %v759, %v761
        %v763 = vadd.f32 %v759, %v762
        %vm764 = vweird.f32 %v546
        %vm765 = vweird.f32 %v759
        %vm766 = vmor %vm764, %vm765
        %v767 = vsel %vm766, %v759, %v763
        %v768 = vand.u32 2147483647, %v546
        %vm769 = vcmp.eq.f32.partialorder %v768, 8.507059e+37
        %v770 = vand.u32 %v546, 2147483648
        %v771 = vor.u32 1.1754944e-38, %v770
        %v772 = vsel %vm769, %v771, %v767
        %v773 = vmul.f32 32.0, %v772
        %v774 = vrcp.pop %v548
        %v775 = vmul.f32 %v548, %v774
        %v776 = vsub.f32 1.0, %v775
        %v777 = vmul.f32 %v774, %v776
        %v778 = vadd.f32 %v774, %v777
        %vm779 = vweird.f32 %v548
        %vm780 = vweird.f32 %v774
        %vm781 = vmor %vm779, %vm780
        %v782 = vsel %vm781, %v774, %v778
        %v783 = vand.u32 2147483647, %v548
        %vm784 = vcmp.eq.f32.partialorder %v783, 8.507059e+37
        %v785 = vand.u32 %v548, 2147483648
        %v786 = vor.u32 1.1754944e-38, %v785
        %v787 = vsel %vm784, %v786, %v782
        %v788 = vmul.f32 32.0, %v787
        %v789 = vmul.f32 %v486, %v563
        %v790 = vmul.f32 %v488, %v578
        %v791 = vmul.f32 %v490, %v593
        %v792 = vmul.f32 %v492, %v608
        %v793 = vmul.f32 %v494, %v623
        %v794 = vmul.f32 %v496, %v638
        %v795 = vmul.f32 %v498, %v653
        %v796 = vmul.f32 %v500, %v668
        %v797 = vmul.f32 %v502, %v683
        %v798 = vmul.f32 %v504, %v698
        %v799 = vmul.f32 %v506, %v713
        %v800 = vmul.f32 %v508, %v728
        %v801 = vmul.f32 %v510, %v743
        %v802 = vmul.f32 %v512, %v758
        %v803 = vmul.f32 %v514, %v773
        %v804 = vmul.f32 %v516, %v788
        %v805 = vld [vmem:[#allocation5] sm:$0xff]
        %v806 = vld [vmem:[#allocation5 + $0x8] sm:$0xff]
        %v807 = vld [vmem:[#allocation5 + $0x10] sm:$0xff]
        %v808 = vld [vmem:[#allocation5 + $0x18] sm:$0xff]
        %v809 = vld [vmem:[#allocation5 + $0x20] sm:$0xff]
        %v810 = vld [vmem:[#allocation5 + $0x28] sm:$0xff]
        %v811 = vld [vmem:[#allocation5 + $0x30] sm:$0xff]
        %v812 = vld [vmem:[#allocation5 + $0x38] sm:$0xff]
        %v813 = vld [vmem:[#allocation5 + $0x40] sm:$0xff]
        %v814 = vld [vmem:[#allocation5 + $0x48] sm:$0xff]
        %v815 = vld [vmem:[#allocation5 + $0x50] sm:$0xff]
        %v816 = vld [vmem:[#allocation5 + $0x58] sm:$0xff]
        %v817 = vld [vmem:[#allocation5 + $0x60] sm:$0xff]
        %v818 = vld [vmem:[#allocation5 + $0x68] sm:$0xff]
        %v819 = vld [vmem:[#allocation5 + $0x70] sm:$0xff]
        %v820 = vld [vmem:[#allocation5 + $0x78] sm:$0xff]
        %821 = vmatpush.msra.mxu0 %v820
        %822 = vmatpush.msra.mxu0 %v819
        %823 = vmatpush.msra.mxu0 %v818
        %824 = vmatpush.msra.mxu0 %v817
        %825 = vmatpush.msra.mxu0 %v816
        %826 = vmatpush.msra.mxu0 %v815
        %827 = vmatpush.msra.mxu0 %v814
        %828 = vmatpush.msra.mxu0 %v813
        %829 = vmatpush.msra.mxu0 %v812
        %830 = vmatpush.msra.mxu0 %v811
        %831 = vmatpush.msra.mxu0 %v810
        %832 = vmatpush.msra.mxu0 %v809
        %833 = vmatpush.msra.mxu0 %v808
        %834 = vmatpush.msra.mxu0 %v807
        %835 = vmatpush.msra.mxu0 %v806
        %836 = vmatpush.msra.mxu0 %v805
        %837 = vmatmul.f32.gmra.mxu0 %v340
        %v838 = vpop.f32.mrf.mxu0
        %v839 = vadd.f32 0.0, %v838
        %840 = vmatmul.f32.gmra.mxu0 %v341
        %v841 = vpop.f32.mrf.mxu0
        %v842 = vadd.f32 0.0, %v841
        %843 = vmatmul.f32.gmra.mxu0 %v342
        %v844 = vpop.f32.mrf.mxu0
        %v845 = vadd.f32 0.0, %v844
        %846 = vmatmul.f32.gmra.mxu0 %v343
        %v847 = vpop.f32.mrf.mxu0
        %v848 = vadd.f32 0.0, %v847
        %849 = vmatmul.f32.gmra.mxu0 %v344
        %v850 = vpop.f32.mrf.mxu0
        %v851 = vadd.f32 0.0, %v850
        %852 = vmatmul.f32.gmra.mxu0 %v345
        %v853 = vpop.f32.mrf.mxu0
        %v854 = vadd.f32 0.0, %v853
        %855 = vmatmul.f32.gmra.mxu0 %v346
        %v856 = vpop.f32.mrf.mxu0
        %v857 = vadd.f32 0.0, %v856
        %858 = vmatmul.f32.gmra.mxu0 %v347
        %v859 = vpop.f32.mrf.mxu0
        %v860 = vadd.f32 0.0, %v859
        %861 = vmatmul.f32.gmra.mxu0 %v348
        %v862 = vpop.f32.mrf.mxu0
        %v863 = vadd.f32 0.0, %v862
        %864 = vmatmul.f32.gmra.mxu0 %v349
        %v865 = vpop.f32.mrf.mxu0
        %v866 = vadd.f32 0.0, %v865
        %867 = vmatmul.f32.gmra.mxu0 %v350
        %v868 = vpop.f32.mrf.mxu0
        %v869 = vadd.f32 0.0, %v868
        %870 = vmatmul.f32.gmra.mxu0 %v351
        %v871 = vpop.f32.mrf.mxu0
        %v872 = vadd.f32 0.0, %v871
        %873 = vmatmul.f32.gmra.mxu0 %v352
        %v874 = vpop.f32.mrf.mxu0
        %v875 = vadd.f32 0.0, %v874
        %876 = vmatmul.f32.gmra.mxu0 %v353
        %v877 = vpop.f32.mrf.mxu0
        %v878 = vadd.f32 0.0, %v877
        %879 = vmatmul.f32.gmra.mxu0 %v354
        %v880 = vpop.f32.mrf.mxu0
        %v881 = vadd.f32 0.0, %v880
        %882 = vmatmul.f32.gmra.mxu0 %v355
        %v883 = vpop.f32.mrf.mxu0
        %v884 = vadd.f32 0.0, %v883
        %885 = vdwg.mxu0
        %v886 = vtanh.pop %v839
        %v887 = vtanh.pop %v842
        %v888 = vtanh.pop %v845
        %v889 = vtanh.pop %v848
        %v890 = vtanh.pop %v851
        %v891 = vtanh.pop %v854
        %v892 = vtanh.pop %v857
        %v893 = vtanh.pop %v860
        %v894 = vtanh.pop %v863
        %v895 = vtanh.pop %v866
        %v896 = vtanh.pop %v869
        %v897 = vtanh.pop %v872
        %v898 = vtanh.pop %v875
        %v899 = vtanh.pop %v878
        %v900 = vtanh.pop %v881
        %v901 = vtanh.pop %v884
        %v902 = vld [vmem:[#allocation7] sm:$0xff]
        %v903 = vld [vmem:[#allocation7 + $0x8] sm:$0xff]
        %v904 = vld [vmem:[#allocation7 + $0x10] sm:$0xff]
        %v905 = vld [vmem:[#allocation7 + $0x18] sm:$0xff]
        %v906 = vld [vmem:[#allocation7 + $0x20] sm:$0xff]
        %v907 = vld [vmem:[#allocation7 + $0x28] sm:$0xff]
        %v908 = vld [vmem:[#allocation7 + $0x30] sm:$0xff]
        %v909 = vld [vmem:[#allocation7 + $0x38] sm:$0xff]
        %v910 = vld [vmem:[#allocation7 + $0x40] sm:$0xff]
        %v911 = vld [vmem:[#allocation7 + $0x48] sm:$0xff]
        %v912 = vld [vmem:[#allocation7 + $0x50] sm:$0xff]
        %v913 = vld [vmem:[#allocation7 + $0x58] sm:$0xff]
        %v914 = vld [vmem:[#allocation7 + $0x60] sm:$0xff]
        %v915 = vld [vmem:[#allocation7 + $0x68] sm:$0xff]
        %v916 = vld [vmem:[#allocation7 + $0x70] sm:$0xff]
        %v917 = vld [vmem:[#allocation7 + $0x78] sm:$0xff]
        %918 = vmatpush.msra.mxu0 %v917
        %919 = vmatpush.msra.mxu0 %v916
        %920 = vmatpush.msra.mxu0 %v915
        %921 = vmatpush.msra.mxu0 %v914
        %922 = vmatpush.msra.mxu0 %v913
        %923 = vmatpush.msra.mxu0 %v912
        %924 = vmatpush.msra.mxu0 %v911
        %925 = vmatpush.msra.mxu0 %v910
        %926 = vmatpush.msra.mxu0 %v909
        %927 = vmatpush.msra.mxu0 %v908
        %928 = vmatpush.msra.mxu0 %v907
        %929 = vmatpush.msra.mxu0 %v906
        %930 = vmatpush.msra.mxu0 %v905
        %931 = vmatpush.msra.mxu0 %v904
        %932 = vmatpush.msra.mxu0 %v903
        %933 = vmatpush.msra.mxu0 %v902
        %934 = vmatmul.f32.gmra.mxu0 %v886
        %v935 = vpop.f32.mrf.mxu0
        %v936 = vadd.f32 0.0, %v935
        %937 = vmatmul.f32.gmra.mxu0 %v887
        %v938 = vpop.f32.mrf.mxu0
        %v939 = vadd.f32 0.0, %v938
        %940 = vmatmul.f32.gmra.mxu0 %v888
        %v941 = vpop.f32.mrf.mxu0
        %v942 = vadd.f32 0.0, %v941
        %943 = vmatmul.f32.gmra.mxu0 %v889
        %v944 = vpop.f32.mrf.mxu0
        %v945 = vadd.f32 0.0, %v944
        %946 = vmatmul.f32.gmra.mxu0 %v890
        %v947 = vpop.f32.mrf.mxu0
        %v948 = vadd.f32 0.0, %v947
        %949 = vmatmul.f32.gmra.mxu0 %v891
        %v950 = vpop.f32.mrf.mxu0
        %v951 = vadd.f32 0.0, %v950
        %952 = vmatmul.f32.gmra.mxu0 %v892
        %v953 = vpop.f32.mrf.mxu0
        %v954 = vadd.f32 0.0, %v953
        %955 = vmatmul.f32.gmra.mxu0 %v893
        %v956 = vpop.f32.mrf.mxu0
        %v957 = vadd.f32 0.0, %v956
        %958 = vmatmul.f32.gmra.mxu0 %v894
        %v959 = vpop.f32.mrf.mxu0
        %v960 = vadd.f32 0.0, %v959
        %961 = vmatmul.f32.gmra.mxu0 %v895
        %v962 = vpop.f32.mrf.mxu0
        %v963 = vadd.f32 0.0, %v962
        %964 = vmatmul.f32.gmra.mxu0 %v896
        %v965 = vpop.f32.mrf.mxu0
        %v966 = vadd.f32 0.0, %v965
        %967 = vmatmul.f32.gmra.mxu0 %v897
        %v968 = vpop.f32.mrf.mxu0
        %v969 = vadd.f32 0.0, %v968
        %970 = vmatmul.f32.gmra.mxu0 %v898
        %v971 = vpop.f32.mrf.mxu0
        %v972 = vadd.f32 0.0, %v971
        %973 = vmatmul.f32.gmra.mxu0 %v899
        %v974 = vpop.f32.mrf.mxu0
        %v975 = vadd.f32 0.0, %v974
        %976 = vmatmul.f32.gmra.mxu0 %v900
        %v977 = vpop.f32.mrf.mxu0
        %v978 = vadd.f32 0.0, %v977
        %979 = vmatmul.f32.gmra.mxu0 %v901
        %v980 = vpop.f32.mrf.mxu0
        %v981 = vadd.f32 0.0, %v980
        %982 = vdwg.mxu0
        %v983 = vtanh.pop %v936
        %v984 = vtanh.pop %v939
        %v985 = vtanh.pop %v942
        %v986 = vtanh.pop %v945
        %v987 = vtanh.pop %v948
        %v988 = vtanh.pop %v951
        %v989 = vtanh.pop %v954
        %v990 = vtanh.pop %v957
        %v991 = vtanh.pop %v960
        %v992 = vtanh.pop %v963
        %v993 = vtanh.pop %v966
        %v994 = vtanh.pop %v969
        %v995 = vtanh.pop %v972
        %v996 = vtanh.pop %v975
        %v997 = vtanh.pop %v978
        %v998 = vtanh.pop %v981
        %v999 = vmul.f32 %v983, %v789
        %v1000 = vmul.f32 %v984, %v790
        %v1001 = vmul.f32 %v985, %v791
        %v1002 = vmul.f32 %v986, %v792
        %v1003 = vmul.f32 %v987, %v793
        %v1004 = vmul.f32 %v988, %v794
        %v1005 = vmul.f32 %v989, %v795
        %v1006 = vmul.f32 %v990, %v796
        %v1007 = vmul.f32 %v991, %v797
        %v1008 = vmul.f32 %v992, %v798
        %v1009 = vmul.f32 %v993, %v799
        %v1010 = vmul.f32 %v994, %v800
        %v1011 = vmul.f32 %v995, %v801
        %v1012 = vmul.f32 %v996, %v802
        %v1013 = vmul.f32 %v997, %v803
        %v1014 = vmul.f32 %v998, %v804
        %v1015 = vld [vmem:[#allocation8] sm:$0xff]
        %v1016 = vld [vmem:[#allocation8 + $0x8] sm:$0xff]
        %v1017 = vld [vmem:[#allocation8 + $0x10] sm:$0xff]
        %v1018 = vld [vmem:[#allocation8 + $0x18] sm:$0xff]
        %v1019 = vld [vmem:[#allocation8 + $0x20] sm:$0xff]
        %v1020 = vld [vmem:[#allocation8 + $0x28] sm:$0xff]
        %v1021 = vld [vmem:[#allocation8 + $0x30] sm:$0xff]
        %v1022 = vld [vmem:[#allocation8 + $0x38] sm:$0xff]
        %v1023 = vld [vmem:[#allocation8 + $0x40] sm:$0xff]
        %v1024 = vld [vmem:[#allocation8 + $0x48] sm:$0xff]
        %v1025 = vld [vmem:[#allocation8 + $0x50] sm:$0xff]
        %v1026 = vld [vmem:[#allocation8 + $0x58] sm:$0xff]
        %v1027 = vld [vmem:[#allocation8 + $0x60] sm:$0xff]
        %v1028 = vld [vmem:[#allocation8 + $0x68] sm:$0xff]
        %v1029 = vld [vmem:[#allocation8 + $0x70] sm:$0xff]
        %v1030 = vld [vmem:[#allocation8 + $0x78] sm:$0xff]
        %v1031 = vld [vmem:[%s5] sm:$0x1]
        %v1033 = vperm.slane %v1031, 0
        %1035 = vmatpush.msra.mxu0 %v1030
        %1036 = vmatpush.msra.mxu0 %v1029
        %1037 = vmatpush.msra.mxu0 %v1028
        %1038 = vmatpush.msra.mxu0 %v1027
        %1039 = vmatpush.msra.mxu0 %v1026
        %1040 = vmatpush.msra.mxu0 %v1025
        %1041 = vmatpush.msra.mxu0 %v1024
        %1042 = vmatpush.msra.mxu0 %v1023
        %1043 = vmatpush.msra.mxu0 %v1022
        %1044 = vmatpush.msra.mxu0 %v1021
        %1045 = vmatpush.msra.mxu0 %v1020
        %1046 = vmatpush.msra.mxu0 %v1019
        %1047 = vmatpush.msra.mxu0 %v1018
        %1048 = vmatpush.msra.mxu0 %v1017
        %1049 = vmatpush.msra.mxu0 %v1016
        %1050 = vmatpush.msra.mxu0 %v1015
        %1051 = vmatmul.f32.gmra.mxu0 %v999
        %v1052 = vpop.f32.mrf.mxu0
        %v1053 = vadd.f32 %v1033, %v1052
        %1054 = vmatmul.f32.gmra.mxu0 %v1000
        %v1055 = vpop.f32.mrf.mxu0
        %v1056 = vadd.f32 %v1033, %v1055
        %1057 = vmatmul.f32.gmra.mxu0 %v1001
        %v1058 = vpop.f32.mrf.mxu0
        %v1059 = vadd.f32 %v1033, %v1058
        %1060 = vmatmul.f32.gmra.mxu0 %v1002
        %v1061 = vpop.f32.mrf.mxu0
        %v1062 = vadd.f32 %v1033, %v1061
        %1063 = vmatmul.f32.gmra.mxu0 %v1003
        %v1064 = vpop.f32.mrf.mxu0
        %v1065 = vadd.f32 %v1033, %v1064
        %1066 = vmatmul.f32.gmra.mxu0 %v1004
        %v1067 = vpop.f32.mrf.mxu0
        %v1068 = vadd.f32 %v1033, %v1067
        %1069 = vmatmul.f32.gmra.mxu0 %v1005
        %v1070 = vpop.f32.mrf.mxu0
        %v1071 = vadd.f32 %v1033, %v1070
        %1072 = vmatmul.f32.gmra.mxu0 %v1006
        %v1073 = vpop.f32.mrf.mxu0
        %v1074 = vadd.f32 %v1033, %v1073
        %1075 = vmatmul.f32.gmra.mxu0 %v1007
        %v1076 = vpop.f32.mrf.mxu0
        %v1077 = vadd.f32 %v1033, %v1076
        %1078 = vmatmul.f32.gmra.mxu0 %v1008
        %v1079 = vpop.f32.mrf.mxu0
        %v1080 = vadd.f32 %v1033, %v1079
        %1081 = vmatmul.f32.gmra.mxu0 %v1009
        %v1082 = vpop.f32.mrf.mxu0
        %v1083 = vadd.f32 %v1033, %v1082
        %1084 = vmatmul.f32.gmra.mxu0 %v1010
        %v1085 = vpop.f32.mrf.mxu0
        %v1086 = vadd.f32 %v1033, %v1085
        %1087 = vmatmul.f32.gmra.mxu0 %v1011
        %v1088 = vpop.f32.mrf.mxu0
        %v1089 = vadd.f32 %v1033, %v1088
        %1090 = vmatmul.f32.gmra.mxu0 %v1012
        %v1091 = vpop.f32.mrf.mxu0
        %v1092 = vadd.f32 %v1033, %v1091
        %1093 = vmatmul.f32.gmra.mxu0 %v1013
        %v1094 = vpop.f32.mrf.mxu0
        %v1095 = vadd.f32 %v1033, %v1094
        %1096 = vmatmul.f32.gmra.mxu0 %v1014
        %v1097 = vpop.f32.mrf.mxu0
        %v1098 = vadd.f32 %v1033, %v1097
        %1099 = vdwg.mxu0
        %v1100 = vmul.f32 %v340, %v1053
        %v1101 = vmul.f32 %v341, %v1056
        %v1102 = vmul.f32 %v342, %v1059
        %v1103 = vmul.f32 %v343, %v1062
        %v1104 = vmul.f32 %v344, %v1065
        %v1105 = vmul.f32 %v345, %v1068
        %v1106 = vmul.f32 %v346, %v1071
        %v1107 = vmul.f32 %v347, %v1074
        %v1108 = vmul.f32 %v348, %v1077
        %v1109 = vmul.f32 %v349, %v1080
        %v1110 = vmul.f32 %v350, %v1083
        %v1111 = vmul.f32 %v351, %v1086
        %v1112 = vmul.f32 %v352, %v1089
        %v1113 = vmul.f32 %v353, %v1092
        %v1114 = vmul.f32 %v354, %v1095
        %v1115 = vmul.f32 %v355, %v1098
        %v1116 = vadd.f32 %v340, %v1100
        %v1117 = vadd.f32 %v341, %v1101
        %v1118 = vadd.f32 %v342, %v1102
        %v1119 = vadd.f32 %v343, %v1103
        %v1120 = vadd.f32 %v344, %v1104
        %v1121 = vadd.f32 %v345, %v1105
        %v1122 = vadd.f32 %v346, %v1106
        %v1123 = vadd.f32 %v347, %v1107
        %v1124 = vadd.f32 %v348, %v1108
        %v1125 = vadd.f32 %v349, %v1109
        %v1126 = vadd.f32 %v350, %v1110
        %v1127 = vadd.f32 %v351, %v1111
        %v1128 = vadd.f32 %v352, %v1112
        %v1129 = vadd.f32 %v353, %v1113
        %v1130 = vadd.f32 %v354, %v1114
        %v1131 = vadd.f32 %v355, %v1115
        %1132 = vmatpush.msra.mxu0 %v371
        %1133 = vmatpush.msra.mxu0 %v370
        %1134 = vmatpush.msra.mxu0 %v369
        %1135 = vmatpush.msra.mxu0 %v368
        %1136 = vmatpush.msra.mxu0 %v367
        %1137 = vmatpush.msra.mxu0 %v366
        %1138 = vmatpush.msra.mxu0 %v365
        %1139 = vmatpush.msra.mxu0 %v364
        %1140 = vmatpush.msra.mxu0 %v363
        %1141 = vmatpush.msra.mxu0 %v362
        %1142 = vmatpush.msra.mxu0 %v361
        %1143 = vmatpush.msra.mxu0 %v360
        %1144 = vmatpush.msra.mxu0 %v359
        %1145 = vmatpush.msra.mxu0 %v358
        %1146 = vmatpush.msra.mxu0 %v357
        %1147 = vmatpush.msra.mxu0 %v356
        %1148 = vmatmul.f32.gmra.mxu0 %v1116
        %v1149 = vpop.f32.mrf.mxu0
        %v1150 = vadd.f32 0.0, %v1149
        %1151 = vmatmul.f32.gmra.mxu0 %v1117
        %v1152 = vpop.f32.mrf.mxu0
        %v1153 = vadd.f32 0.0, %v1152
        %1154 = vmatmul.f32.gmra.mxu0 %v1118
        %v1155 = vpop.f32.mrf.mxu0
        %v1156 = vadd.f32 0.0, %v1155
        %1157 = vmatmul.f32.gmra.mxu0 %v1119
        %v1158 = vpop.f32.mrf.mxu0
        %v1159 = vadd.f32 0.0, %v1158
        %1160 = vmatmul.f32.gmra.mxu0 %v1120
        %v1161 = vpop.f32.mrf.mxu0
        %v1162 = vadd.f32 0.0, %v1161
        %1163 = vmatmul.f32.gmra.mxu0 %v1121
        %v1164 = vpop.f32.mrf.mxu0
        %v1165 = vadd.f32 0.0, %v1164
        %1166 = vmatmul.f32.gmra.mxu0 %v1122
        %v1167 = vpop.f32.mrf.mxu0
        %v1168 = vadd.f32 0.0, %v1167
        %1169 = vmatmul.f32.gmra.mxu0 %v1123
        %v1170 = vpop.f32.mrf.mxu0
        %v1171 = vadd.f32 0.0, %v1170
        %1172 = vmatmul.f32.gmra.mxu0 %v1124
        %v1173 = vpop.f32.mrf.mxu0
        %v1174 = vadd.f32 0.0, %v1173
        %1175 = vmatmul.f32.gmra.mxu0 %v1125
        %v1176 = vpop.f32.mrf.mxu0
        %v1177 = vadd.f32 0.0, %v1176
        %1178 = vmatmul.f32.gmra.mxu0 %v1126
        %v1179 = vpop.f32.mrf.mxu0
        %v1180 = vadd.f32 0.0, %v1179
        %1181 = vmatmul.f32.gmra.mxu0 %v1127
        %v1182 = vpop.f32.mrf.mxu0
        %v1183 = vadd.f32 0.0, %v1182
        %1184 = vmatmul.f32.gmra.mxu0 %v1128
        %v1185 = vpop.f32.mrf.mxu0
        %v1186 = vadd.f32 0.0, %v1185
        %1187 = vmatmul.f32.gmra.mxu0 %v1129
        %v1188 = vpop.f32.mrf.mxu0
        %v1189 = vadd.f32 0.0, %v1188
        %1190 = vmatmul.f32.gmra.mxu0 %v1130
        %v1191 = vpop.f32.mrf.mxu0
        %v1192 = vadd.f32 0.0, %v1191
        %1193 = vmatmul.f32.gmra.mxu0 %v1131
        %v1194 = vpop.f32.mrf.mxu0
        %v1195 = vadd.f32 0.0, %v1194
        %1196 = vdwg.mxu0
        %1197 = vmax.xlane.f32.xlu0 %v1150
        %v1198 = vpop.xlane.xlu0 %1197
        %1199 = vmax.xlane.f32.xlu0 %v1153
        %v1200 = vpop.xlane.xlu0 %1199
        %1201 = vmax.xlane.f32.xlu0 %v1156
        %v1202 = vpop.xlane.xlu0 %1201
        %1203 = vmax.xlane.f32.xlu0 %v1159
        %v1204 = vpop.xlane.xlu0 %1203
        %1205 = vmax.xlane.f32.xlu0 %v1162
        %v1206 = vpop.xlane.xlu0 %1205
        %1207 = vmax.xlane.f32.xlu0 %v1165
        %v1208 = vpop.xlane.xlu0 %1207
        %1209 = vmax.xlane.f32.xlu0 %v1168
        %v1210 = vpop.xlane.xlu0 %1209
        %1211 = vmax.xlane.f32.xlu0 %v1171
        %v1212 = vpop.xlane.xlu0 %1211
        %1213 = vmax.xlane.f32.xlu0 %v1174
        %v1214 = vpop.xlane.xlu0 %1213
        %1215 = vmax.xlane.f32.xlu0 %v1177
        %v1216 = vpop.xlane.xlu0 %1215
        %1217 = vmax.xlane.f32.xlu0 %v1180
        %v1218 = vpop.xlane.xlu0 %1217
        %1219 = vmax.xlane.f32.xlu0 %v1183
        %v1220 = vpop.xlane.xlu0 %1219
        %1221 = vmax.xlane.f32.xlu0 %v1186
        %v1222 = vpop.xlane.xlu0 %1221
        %1223 = vmax.xlane.f32.xlu0 %v1189
        %v1224 = vpop.xlane.xlu0 %1223
        %1225 = vmax.xlane.f32.xlu0 %v1192
        %v1226 = vpop.xlane.xlu0 %1225
        %1227 = vmax.xlane.f32.xlu0 %v1195
        %v1228 = vpop.xlane.xlu0 %1227
        %v1229 = vsub.f32 %v1150, %v1198
        %v1230 = vsub.f32 %v1153, %v1200
        %v1231 = vsub.f32 %v1156, %v1202
        %v1232 = vsub.f32 %v1159, %v1204
        %v1233 = vsub.f32 %v1162, %v1206
        %v1234 = vsub.f32 %v1165, %v1208
        %v1235 = vsub.f32 %v1168, %v1210
        %v1236 = vsub.f32 %v1171, %v1212
        %v1237 = vsub.f32 %v1174, %v1214
        %v1238 = vsub.f32 %v1177, %v1216
        %v1239 = vsub.f32 %v1180, %v1218
        %v1240 = vsub.f32 %v1183, %v1220
        %v1241 = vsub.f32 %v1186, %v1222
        %v1242 = vsub.f32 %v1189, %v1224
        %v1243 = vsub.f32 %v1192, %v1226
        %v1244 = vsub.f32 %v1195, %v1228
        %v1245 = vmul.f32 %v1229, 1.442695
        %v1246 = vpow.pop %v1245
        %v1247 = vmul.f32 %v1230, 1.442695
        %v1248 = vpow.pop %v1247
        %v1249 = vmul.f32 %v1231, 1.442695
        %v1250 = vpow.pop %v1249
        %v1251 = vmul.f32 %v1232, 1.442695
        %v1252 = vpow.pop %v1251
        %v1253 = vmul.f32 %v1233, 1.442695
        %v1254 = vpow.pop %v1253
        %v1255 = vmul.f32 %v1234, 1.442695
        %v1256 = vpow.pop %v1255
        %v1257 = vmul.f32 %v1235, 1.442695
        %v1258 = vpow.pop %v1257
        %v1259 = vmul.f32 %v1236, 1.442695
        %v1260 = vpow.pop %v1259
        %v1261 = vmul.f32 %v1237, 1.442695
        %v1262 = vpow.pop %v1261
        %v1263 = vmul.f32 %v1238, 1.442695
        %v1264 = vpow.pop %v1263
        %v1265 = vmul.f32 %v1239, 1.442695
        %v1266 = vpow.pop %v1265
        %v1267 = vmul.f32 %v1240, 1.442695
        %v1268 = vpow.pop %v1267
        %v1269 = vmul.f32 %v1241, 1.442695
        %v1270 = vpow.pop %v1269
        %v1271 = vmul.f32 %v1242, 1.442695
        %v1272 = vpow.pop %v1271
        %v1273 = vmul.f32 %v1243, 1.442695
        %v1274 = vpow.pop %v1273
        %v1275 = vmul.f32 %v1244, 1.442695
        %v1276 = vpow.pop %v1275
        %1277 = vadd.xlane.f32.xlu0 %v1246
        %v1278 = vpop.xlane.xlu0 %1277
        %1279 = vadd.xlane.f32.xlu0 %v1248
        %v1280 = vpop.xlane.xlu0 %1279
        %1281 = vadd.xlane.f32.xlu0 %v1250
        %v1282 = vpop.xlane.xlu0 %1281
        %1283 = vadd.xlane.f32.xlu0 %v1252
        %v1284 = vpop.xlane.xlu0 %1283
        %1285 = vadd.xlane.f32.xlu0 %v1254
        %v1286 = vpop.xlane.xlu0 %1285
        %1287 = vadd.xlane.f32.xlu0 %v1256
        %v1288 = vpop.xlane.xlu0 %1287
        %1289 = vadd.xlane.f32.xlu0 %v1258
        %v1290 = vpop.xlane.xlu0 %1289
        %1291 = vadd.xlane.f32.xlu0 %v1260
        %v1292 = vpop.xlane.xlu0 %1291
        %1293 = vadd.xlane.f32.xlu0 %v1262
        %v1294 = vpop.xlane.xlu0 %1293
        %1295 = vadd.xlane.f32.xlu0 %v1264
        %v1296 = vpop.xlane.xlu0 %1295
        %1297 = vadd.xlane.f32.xlu0 %v1266
        %v1298 = vpop.xlane.xlu0 %1297
        %1299 = vadd.xlane.f32.xlu0 %v1268
        %v1300 = vpop.xlane.xlu0 %1299
        %1301 = vadd.xlane.f32.xlu0 %v1270
        %v1302 = vpop.xlane.xlu0 %1301
        %1303 = vadd.xlane.f32.xlu0 %v1272
        %v1304 = vpop.xlane.xlu0 %1303
        %1305 = vadd.xlane.f32.xlu0 %v1274
        %v1306 = vpop.xlane.xlu0 %1305
        %1307 = vadd.xlane.f32.xlu0 %v1276
        %v1308 = vpop.xlane.xlu0 %1307
        %v1309 = vrcp.pop %v1278
        %v1310 = vmul.f32 %v1278, %v1309
        %v1311 = vsub.f32 1.0, %v1310
        %v1312 = vmul.f32 %v1309, %v1311
        %v1313 = vadd.f32 %v1309, %v1312
        %vm1314 = vweird.f32 %v1278
        %vm1315 = vweird.f32 %v1309
        %vm1316 = vmor %vm1314, %vm1315
        %v1317 = vsel %vm1316, %v1309, %v1313
        %v1318 = vand.u32 2147483647, %v1278
        %vm1319 = vcmp.eq.f32.partialorder %v1318, 8.507059e+37
        %v1320 = vand.u32 %v1278, 2147483648
        %v1321 = vor.u32 1.1754944e-38, %v1320
        %v1322 = vsel %vm1319, %v1321, %v1317
        %v1323 = vmul.f32 32.0, %v1322
        %v1324 = vrcp.pop %v1280
        %v1325 = vmul.f32 %v1280, %v1324
        %v1326 = vsub.f32 1.0, %v1325
        %v1327 = vmul.f32 %v1324, %v1326
        %v1328 = vadd.f32 %v1324, %v1327
        %vm1329 = vweird.f32 %v1280
        %vm1330 = vweird.f32 %v1324
        %vm1331 = vmor %vm1329, %vm1330
        %v1332 = vsel %vm1331, %v1324, %v1328
        %v1333 = vand.u32 2147483647, %v1280
        %vm1334 = vcmp.eq.f32.partialorder %v1333, 8.507059e+37
        %v1335 = vand.u32 %v1280, 2147483648
        %v1336 = vor.u32 1.1754944e-38, %v1335
        %v1337 = vsel %vm1334, %v1336, %v1332
        %v1338 = vmul.f32 32.0, %v1337
        %v1339 = vrcp.pop %v1282
        %v1340 = vmul.f32 %v1282, %v1339
        %v1341 = vsub.f32 1.0, %v1340
        %v1342 = vmul.f32 %v1339, %v1341
        %v1343 = vadd.f32 %v1339, %v1342
        %vm1344 = vweird.f32 %v1282
        %vm1345 = vweird.f32 %v1339
        %vm1346 = vmor %vm1344, %vm1345
        %v1347 = vsel %vm1346, %v1339, %v1343
        %v1348 = vand.u32 2147483647, %v1282
        %vm1349 = vcmp.eq.f32.partialorder %v1348, 8.507059e+37
        %v1350 = vand.u32 %v1282, 2147483648
        %v1351 = vor.u32 1.1754944e-38, %v1350
        %v1352 = vsel %vm1349, %v1351, %v1347
        %v1353 = vmul.f32 32.0, %v1352
        %v1354 = vrcp.pop %v1284
        %v1355 = vmul.f32 %v1284, %v1354
        %v1356 = vsub.f32 1.0, %v1355
        %v1357 = vmul.f32 %v1354, %v1356
        %v1358 = vadd.f32 %v1354, %v1357
        %vm1359 = vweird.f32 %v1284
        %vm1360 = vweird.f32 %v1354
        %vm1361 = vmor %vm1359, %vm1360
        %v1362 = vsel %vm1361, %v1354, %v1358
        %v1363 = vand.u32 2147483647, %v1284
        %vm1364 = vcmp.eq.f32.partialorder %v1363, 8.507059e+37
        %v1365 = vand.u32 %v1284, 2147483648
        %v1366 = vor.u32 1.1754944e-38, %v1365
        %v1367 = vsel %vm1364, %v1366, %v1362
        %v1368 = vmul.f32 32.0, %v1367
        %v1369 = vrcp.pop %v1286
        %v1370 = vmul.f32 %v1286, %v1369
        %v1371 = vsub.f32 1.0, %v1370
        %v1372 = vmul.f32 %v1369, %v1371
        %v1373 = vadd.f32 %v1369, %v1372
        %vm1374 = vweird.f32 %v1286
        %vm1375 = vweird.f32 %v1369
        %vm1376 = vmor %vm1374, %vm1375
        %v1377 = vsel %vm1376, %v1369, %v1373
        %v1378 = vand.u32 2147483647, %v1286
        %vm1379 = vcmp.eq.f32.partialorder %v1378, 8.507059e+37
        %v1380 = vand.u32 %v1286, 2147483648
        %v1381 = vor.u32 1.1754944e-38, %v1380
        %v1382 = vsel %vm1379, %v1381, %v1377
        %v1383 = vmul.f32 32.0, %v1382
        %v1384 = vrcp.pop %v1288
        %v1385 = vmul.f32 %v1288, %v1384
        %v1386 = vsub.f32 1.0, %v1385
        %v1387 = vmul.f32 %v1384, %v1386
        %v1388 = vadd.f32 %v1384, %v1387
        %vm1389 = vweird.f32 %v1288
        %vm1390 = vweird.f32 %v1384
        %vm1391 = vmor %vm1389, %vm1390
        %v1392 = vsel %vm1391, %v1384, %v1388
        %v1393 = vand.u32 2147483647, %v1288
        %vm1394 = vcmp.eq.f32.partialorder %v1393, 8.507059e+37
        %v1395 = vand.u32 %v1288, 2147483648
        %v1396 = vor.u32 1.1754944e-38, %v1395
        %v1397 = vsel %vm1394, %v1396, %v1392
        %v1398 = vmul.f32 32.0, %v1397
        %v1399 = vrcp.pop %v1290
        %v1400 = vmul.f32 %v1290, %v1399
        %v1401 = vsub.f32 1.0, %v1400
        %v1402 = vmul.f32 %v1399, %v1401
        %v1403 = vadd.f32 %v1399, %v1402
        %vm1404 = vweird.f32 %v1290
        %vm1405 = vweird.f32 %v1399
        %vm1406 = vmor %vm1404, %vm1405
        %v1407 = vsel %vm1406, %v1399, %v1403
        %v1408 = vand.u32 2147483647, %v1290
        %vm1409 = vcmp.eq.f32.partialorder %v1408, 8.507059e+37
        %v1410 = vand.u32 %v1290, 2147483648
        %v1411 = vor.u32 1.1754944e-38, %v1410
        %v1412 = vsel %vm1409, %v1411, %v1407
        %v1413 = vmul.f32 32.0, %v1412
        %v1414 = vrcp.pop %v1292
        %v1415 = vmul.f32 %v1292, %v1414
        %v1416 = vsub.f32 1.0, %v1415
        %v1417 = vmul.f32 %v1414, %v1416
        %v1418 = vadd.f32 %v1414, %v1417
        %vm1419 = vweird.f32 %v1292
        %vm1420 = vweird.f32 %v1414
        %vm1421 = vmor %vm1419, %vm1420
        %v1422 = vsel %vm1421, %v1414, %v1418
        %v1423 = vand.u32 2147483647, %v1292
        %vm1424 = vcmp.eq.f32.partialorder %v1423, 8.507059e+37
        %v1425 = vand.u32 %v1292, 2147483648
        %v1426 = vor.u32 1.1754944e-38, %v1425
        %v1427 = vsel %vm1424, %v1426, %v1422
        %v1428 = vmul.f32 32.0, %v1427
        %v1429 = vrcp.pop %v1294
        %v1430 = vmul.f32 %v1294, %v1429
        %v1431 = vsub.f32 1.0, %v1430
        %v1432 = vmul.f32 %v1429, %v1431
        %v1433 = vadd.f32 %v1429, %v1432
        %vm1434 = vweird.f32 %v1294
        %vm1435 = vweird.f32 %v1429
        %vm1436 = vmor %vm1434, %vm1435
        %v1437 = vsel %vm1436, %v1429, %v1433
        %v1438 = vand.u32 2147483647, %v1294
        %vm1439 = vcmp.eq.f32.partialorder %v1438, 8.507059e+37
        %v1440 = vand.u32 %v1294, 2147483648
        %v1441 = vor.u32 1.1754944e-38, %v1440
        %v1442 = vsel %vm1439, %v1441, %v1437
        %v1443 = vmul.f32 32.0, %v1442
        %v1444 = vrcp.pop %v1296
        %v1445 = vmul.f32 %v1296, %v1444
        %v1446 = vsub.f32 1.0, %v1445
        %v1447 = vmul.f32 %v1444, %v1446
        %v1448 = vadd.f32 %v1444, %v1447
        %vm1449 = vweird.f32 %v1296
        %vm1450 = vweird.f32 %v1444
        %vm1451 = vmor %vm1449, %vm1450
        %v1452 = vsel %vm1451, %v1444, %v1448
        %v1453 = vand.u32 2147483647, %v1296
        %vm1454 = vcmp.eq.f32.partialorder %v1453, 8.507059e+37
        %v1455 = vand.u32 %v1296, 2147483648
        %v1456 = vor.u32 1.1754944e-38, %v1455
        %v1457 = vsel %vm1454, %v1456, %v1452
        %v1458 = vmul.f32 32.0, %v1457
        %v1459 = vrcp.pop %v1298
        %v1460 = vmul.f32 %v1298, %v1459
        %v1461 = vsub.f32 1.0, %v1460
        %v1462 = vmul.f32 %v1459, %v1461
        %v1463 = vadd.f32 %v1459, %v1462
        %vm1464 = vweird.f32 %v1298
        %vm1465 = vweird.f32 %v1459
        %vm1466 = vmor %vm1464, %vm1465
        %v1467 = vsel %vm1466, %v1459, %v1463
        %v1468 = vand.u32 2147483647, %v1298
        %vm1469 = vcmp.eq.f32.partialorder %v1468, 8.507059e+37
        %v1470 = vand.u32 %v1298, 2147483648
        %v1471 = vor.u32 1.1754944e-38, %v1470
        %v1472 = vsel %vm1469, %v1471, %v1467
        %v1473 = vmul.f32 32.0, %v1472
        %v1474 = vrcp.pop %v1300
        %v1475 = vmul.f32 %v1300, %v1474
        %v1476 = vsub.f32 1.0, %v1475
        %v1477 = vmul.f32 %v1474, %v1476
        %v1478 = vadd.f32 %v1474, %v1477
        %vm1479 = vweird.f32 %v1300
        %vm1480 = vweird.f32 %v1474
        %vm1481 = vmor %vm1479, %vm1480
        %v1482 = vsel %vm1481, %v1474, %v1478
        %v1483 = vand.u32 2147483647, %v1300
        %vm1484 = vcmp.eq.f32.partialorder %v1483, 8.507059e+37
        %v1485 = vand.u32 %v1300, 2147483648
        %v1486 = vor.u32 1.1754944e-38, %v1485
        %v1487 = vsel %vm1484, %v1486, %v1482
        %v1488 = vmul.f32 32.0, %v1487
        %v1489 = vrcp.pop %v1302
        %v1490 = vmul.f32 %v1302, %v1489
        %v1491 = vsub.f32 1.0, %v1490
        %v1492 = vmul.f32 %v1489, %v1491
        %v1493 = vadd.f32 %v1489, %v1492
        %vm1494 = vweird.f32 %v1302
        %vm1495 = vweird.f32 %v1489
        %vm1496 = vmor %vm1494, %vm1495
        %v1497 = vsel %vm1496, %v1489, %v1493
        %v1498 = vand.u32 2147483647, %v1302
        %vm1499 = vcmp.eq.f32.partialorder %v1498, 8.507059e+37
        %v1500 = vand.u32 %v1302, 2147483648
        %v1501 = vor.u32 1.1754944e-38, %v1500
        %v1502 = vsel %vm1499, %v1501, %v1497
        %v1503 = vmul.f32 32.0, %v1502
        %v1504 = vrcp.pop %v1304
        %v1505 = vmul.f32 %v1304, %v1504
        %v1506 = vsub.f32 1.0, %v1505
        %v1507 = vmul.f32 %v1504, %v1506
        %v1508 = vadd.f32 %v1504, %v1507
        %vm1509 = vweird.f32 %v1304
        %vm1510 = vweird.f32 %v1504
        %vm1511 = vmor %vm1509, %vm1510
        %v1512 = vsel %vm1511, %v1504, %v1508
        %v1513 = vand.u32 2147483647, %v1304
        %vm1514 = vcmp.eq.f32.partialorder %v1513, 8.507059e+37
        %v1515 = vand.u32 %v1304, 2147483648
        %v1516 = vor.u32 1.1754944e-38, %v1515
        %v1517 = vsel %vm1514, %v1516, %v1512
        %v1518 = vmul.f32 32.0, %v1517
        %v1519 = vrcp.pop %v1306
        %v1520 = vmul.f32 %v1306, %v1519
        %v1521 = vsub.f32 1.0, %v1520
        %v1522 = vmul.f32 %v1519, %v1521
        %v1523 = vadd.f32 %v1519, %v1522
        %vm1524 = vweird.f32 %v1306
        %vm1525 = vweird.f32 %v1519
        %vm1526 = vmor %vm1524, %vm1525
        %v1527 = vsel %vm1526, %v1519, %v1523
        %v1528 = vand.u32 2147483647, %v1306
        %vm1529 = vcmp.eq.f32.partialorder %v1528, 8.507059e+37
        %v1530 = vand.u32 %v1306, 2147483648
        %v1531 = vor.u32 1.1754944e-38, %v1530
        %v1532 = vsel %vm1529, %v1531, %v1527
        %v1533 = vmul.f32 32.0, %v1532
        %v1534 = vrcp.pop %v1308
        %v1535 = vmul.f32 %v1308, %v1534
        %v1536 = vsub.f32 1.0, %v1535
        %v1537 = vmul.f32 %v1534, %v1536
        %v1538 = vadd.f32 %v1534, %v1537
        %vm1539 = vweird.f32 %v1308
        %vm1540 = vweird.f32 %v1534
        %vm1541 = vmor %vm1539, %vm1540
        %v1542 = vsel %vm1541, %v1534, %v1538
        %v1543 = vand.u32 2147483647, %v1308
        %vm1544 = vcmp.eq.f32.partialorder %v1543, 8.507059e+37
        %v1545 = vand.u32 %v1308, 2147483648
        %v1546 = vor.u32 1.1754944e-38, %v1545
        %v1547 = vsel %vm1544, %v1546, %v1542
        %v1548 = vmul.f32 32.0, %v1547
        %v1549 = vmul.f32 %v1246, %v1323
        %v1550 = vmul.f32 %v1248, %v1338
        %v1551 = vmul.f32 %v1250, %v1353
        %v1552 = vmul.f32 %v1252, %v1368
        %v1553 = vmul.f32 %v1254, %v1383
        %v1554 = vmul.f32 %v1256, %v1398
        %v1555 = vmul.f32 %v1258, %v1413
        %v1556 = vmul.f32 %v1260, %v1428
        %v1557 = vmul.f32 %v1262, %v1443
        %v1558 = vmul.f32 %v1264, %v1458
        %v1559 = vmul.f32 %v1266, %v1473
        %v1560 = vmul.f32 %v1268, %v1488
        %v1561 = vmul.f32 %v1270, %v1503
        %v1562 = vmul.f32 %v1272, %v1518
        %v1563 = vmul.f32 %v1274, %v1533
        %v1564 = vmul.f32 %v1276, %v1548
        %s1565 = scalar_lea.vmem [#allocation5], 128
        %v1566 = vld [vmem:[%s1565] sm:$0xff]
        %v1567 = vld [vmem:[%s1565 + $0x8] sm:$0xff]
        %v1568 = vld [vmem:[%s1565 + $0x10] sm:$0xff]
        %v1569 = vld [vmem:[%s1565 + $0x18] sm:$0xff]
        %v1570 = vld [vmem:[%s1565 + $0x20] sm:$0xff]
        %v1571 = vld [vmem:[%s1565 + $0x28] sm:$0xff]
        %v1572 = vld [vmem:[%s1565 + $0x30] sm:$0xff]
        %v1573 = vld [vmem:[%s1565 + $0x38] sm:$0xff]
        %v1574 = vld [vmem:[%s1565 + $0x40] sm:$0xff]
        %v1575 = vld [vmem:[%s1565 + $0x48] sm:$0xff]
        %v1576 = vld [vmem:[%s1565 + $0x50] sm:$0xff]
        %v1577 = vld [vmem:[%s1565 + $0x58] sm:$0xff]
        %v1578 = vld [vmem:[%s1565 + $0x60] sm:$0xff]
        %v1579 = vld [vmem:[%s1565 + $0x68] sm:$0xff]
        %v1580 = vld [vmem:[%s1565 + $0x70] sm:$0xff]
        %v1581 = vld [vmem:[%s1565 + $0x78] sm:$0xff]
        %1582 = vmatpush.msra.mxu0 %v1581
        %1583 = vmatpush.msra.mxu0 %v1580
        %1584 = vmatpush.msra.mxu0 %v1579
        %1585 = vmatpush.msra.mxu0 %v1578
        %1586 = vmatpush.msra.mxu0 %v1577
        %1587 = vmatpush.msra.mxu0 %v1576
        %1588 = vmatpush.msra.mxu0 %v1575
        %1589 = vmatpush.msra.mxu0 %v1574
        %1590 = vmatpush.msra.mxu0 %v1573
        %1591 = vmatpush.msra.mxu0 %v1572
        %1592 = vmatpush.msra.mxu0 %v1571
        %1593 = vmatpush.msra.mxu0 %v1570
        %1594 = vmatpush.msra.mxu0 %v1569
        %1595 = vmatpush.msra.mxu0 %v1568
        %1596 = vmatpush.msra.mxu0 %v1567
        %1597 = vmatpush.msra.mxu0 %v1566
        %1598 = vmatmul.f32.gmra.mxu0 %v1116
        %v1599 = vpop.f32.mrf.mxu0
        %v1600 = vadd.f32 0.0, %v1599
        %1601 = vmatmul.f32.gmra.mxu0 %v1117
        %v1602 = vpop.f32.mrf.mxu0
        %v1603 = vadd.f32 0.0, %v1602
        %1604 = vmatmul.f32.gmra.mxu0 %v1118
        %v1605 = vpop.f32.mrf.mxu0
        %v1606 = vadd.f32 0.0, %v1605
        %1607 = vmatmul.f32.gmra.mxu0 %v1119
        %v1608 = vpop.f32.mrf.mxu0
        %v1609 = vadd.f32 0.0, %v1608
        %1610 = vmatmul.f32.gmra.mxu0 %v1120
        %v1611 = vpop.f32.mrf.mxu0
        %v1612 = vadd.f32 0.0, %v1611
        %1613 = vmatmul.f32.gmra.mxu0 %v1121
        %v1614 = vpop.f32.mrf.mxu0
        %v1615 = vadd.f32 0.0, %v1614
        %1616 = vmatmul.f32.gmra.mxu0 %v1122
        %v1617 = vpop.f32.mrf.mxu0
        %v1618 = vadd.f32 0.0, %v1617
        %1619 = vmatmul.f32.gmra.mxu0 %v1123
        %v1620 = vpop.f32.mrf.mxu0
        %v1621 = vadd.f32 0.0, %v1620
        %1622 = vmatmul.f32.gmra.mxu0 %v1124
        %v1623 = vpop.f32.mrf.mxu0
        %v1624 = vadd.f32 0.0, %v1623
        %1625 = vmatmul.f32.gmra.mxu0 %v1125
        %v1626 = vpop.f32.mrf.mxu0
        %v1627 = vadd.f32 0.0, %v1626
        %1628 = vmatmul.f32.gmra.mxu0 %v1126
        %v1629 = vpop.f32.mrf.mxu0
        %v1630 = vadd.f32 0.0, %v1629
        %1631 = vmatmul.f32.gmra.mxu0 %v1127
        %v1632 = vpop.f32.mrf.mxu0
        %v1633 = vadd.f32 0.0, %v1632
        %1634 = vmatmul.f32.gmra.mxu0 %v1128
        %v1635 = vpop.f32.mrf.mxu0
        %v1636 = vadd.f32 0.0, %v1635
        %1637 = vmatmul.f32.gmra.mxu0 %v1129
        %v1638 = vpop.f32.mrf.mxu0
        %v1639 = vadd.f32 0.0, %v1638
        %1640 = vmatmul.f32.gmra.mxu0 %v1130
        %v1641 = vpop.f32.mrf.mxu0
        %v1642 = vadd.f32 0.0, %v1641
        %1643 = vmatmul.f32.gmra.mxu0 %v1131
        %v1644 = vpop.f32.mrf.mxu0
        %v1645 = vadd.f32 0.0, %v1644
        %1646 = vdwg.mxu0
        %v1647 = vtanh.pop %v1600
        %v1648 = vtanh.pop %v1603
        %v1649 = vtanh.pop %v1606
        %v1650 = vtanh.pop %v1609
        %v1651 = vtanh.pop %v1612
        %v1652 = vtanh.pop %v1615
        %v1653 = vtanh.pop %v1618
        %v1654 = vtanh.pop %v1621
        %v1655 = vtanh.pop %v1624
        %v1656 = vtanh.pop %v1627
        %v1657 = vtanh.pop %v1630
        %v1658 = vtanh.pop %v1633
        %v1659 = vtanh.pop %v1636
        %v1660 = vtanh.pop %v1639
        %v1661 = vtanh.pop %v1642
        %v1662 = vtanh.pop %v1645
        %s1663 = scalar_lea.vmem [#allocation7], 128
        %v1664 = vld [vmem:[%s1663] sm:$0xff]
        %v1665 = vld [vmem:[%s1663 + $0x8] sm:$0xff]
        %v1666 = vld [vmem:[%s1663 + $0x10] sm:$0xff]
        %v1667 = vld [vmem:[%s1663 + $0x18] sm:$0xff]
        %v1668 = vld [vmem:[%s1663 + $0x20] sm:$0xff]
        %v1669 = vld [vmem:[%s1663 + $0x28] sm:$0xff]
        %v1670 = vld [vmem:[%s1663 + $0x30] sm:$0xff]
        %v1671 = vld [vmem:[%s1663 + $0x38] sm:$0xff]
        %v1672 = vld [vmem:[%s1663 + $0x40] sm:$0xff]
        %v1673 = vld [vmem:[%s1663 + $0x48] sm:$0xff]
        %v1674 = vld [vmem:[%s1663 + $0x50] sm:$0xff]
        %v1675 = vld [vmem:[%s1663 + $0x58] sm:$0xff]
        %v1676 = vld [vmem:[%s1663 + $0x60] sm:$0xff]
        %v1677 = vld [vmem:[%s1663 + $0x68] sm:$0xff]
        %v1678 = vld [vmem:[%s1663 + $0x70] sm:$0xff]
        %v1679 = vld [vmem:[%s1663 + $0x78] sm:$0xff]
        %1680 = vmatpush.msra.mxu0 %v1679
        %1681 = vmatpush.msra.mxu0 %v1678
        %1682 = vmatpush.msra.mxu0 %v1677
        %1683 = vmatpush.msra.mxu0 %v1676
        %1684 = vmatpush.msra.mxu0 %v1675
        %1685 = vmatpush.msra.mxu0 %v1674
        %1686 = vmatpush.msra.mxu0 %v1673
        %1687 = vmatpush.msra.mxu0 %v1672
        %1688 = vmatpush.msra.mxu0 %v1671
        %1689 = vmatpush.msra.mxu0 %v1670
        %1690 = vmatpush.msra.mxu0 %v1669
        %1691 = vmatpush.msra.mxu0 %v1668
        %1692 = vmatpush.msra.mxu0 %v1667
        %1693 = vmatpush.msra.mxu0 %v1666
        %1694 = vmatpush.msra.mxu0 %v1665
        %1695 = vmatpush.msra.mxu0 %v1664
        %1696 = vmatmul.f32.gmra.mxu0 %v1647
        %v1697 = vpop.f32.mrf.mxu0
        %v1698 = vadd.f32 0.0, %v1697
        %1699 = vmatmul.f32.gmra.mxu0 %v1648
        %v1700 = vpop.f32.mrf.mxu0
        %v1701 = vadd.f32 0.0, %v1700
        %1702 = vmatmul.f32.gmra.mxu0 %v1649
        %v1703 = vpop.f32.mrf.mxu0
        %v1704 = vadd.f32 0.0, %v1703
        %1705 = vmatmul.f32.gmra.mxu0 %v1650
        %v1706 = vpop.f32.mrf.mxu0
        %v1707 = vadd.f32 0.0, %v1706
        %1708 = vmatmul.f32.gmra.mxu0 %v1651
        %v1709 = vpop.f32.mrf.mxu0
        %v1710 = vadd.f32 0.0, %v1709
        %1711 = vmatmul.f32.gmra.mxu0 %v1652
        %v1712 = vpop.f32.mrf.mxu0
        %v1713 = vadd.f32 0.0, %v1712
        %1714 = vmatmul.f32.gmra.mxu0 %v1653
        %v1715 = vpop.f32.mrf.mxu0
        %v1716 = vadd.f32 0.0, %v1715
        %1717 = vmatmul.f32.gmra.mxu0 %v1654
        %v1718 = vpop.f32.mrf.mxu0
        %v1719 = vadd.f32 0.0, %v1718
        %1720 = vmatmul.f32.gmra.mxu0 %v1655
        %v1721 = vpop.f32.mrf.mxu0
        %v1722 = vadd.f32 0.0, %v1721
        %1723 = vmatmul.f32.gmra.mxu0 %v1656
        %v1724 = vpop.f32.mrf.mxu0
        %v1725 = vadd.f32 0.0, %v1724
        %1726 = vmatmul.f32.gmra.mxu0 %v1657
        %v1727 = vpop.f32.mrf.mxu0
        %v1728 = vadd.f32 0.0, %v1727
        %1729 = vmatmul.f32.gmra.mxu0 %v1658
        %v1730 = vpop.f32.mrf.mxu0
        %v1731 = vadd.f32 0.0, %v1730
        %1732 = vmatmul.f32.gmra.mxu0 %v1659
        %v1733 = vpop.f32.mrf.mxu0
        %v1734 = vadd.f32 0.0, %v1733
        %1735 = vmatmul.f32.gmra.mxu0 %v1660
        %v1736 = vpop.f32.mrf.mxu0
        %v1737 = vadd.f32 0.0, %v1736
        %1738 = vmatmul.f32.gmra.mxu0 %v1661
        %v1739 = vpop.f32.mrf.mxu0
        %v1740 = vadd.f32 0.0, %v1739
        %1741 = vmatmul.f32.gmra.mxu0 %v1662
        %v1742 = vpop.f32.mrf.mxu0
        %v1743 = vadd.f32 0.0, %v1742
        %1744 = vdwg.mxu0
        %v1745 = vtanh.pop %v1698
        %v1746 = vtanh.pop %v1701
        %v1747 = vtanh.pop %v1704
        %v1748 = vtanh.pop %v1707
        %v1749 = vtanh.pop %v1710
        %v1750 = vtanh.pop %v1713
        %v1751 = vtanh.pop %v1716
        %v1752 = vtanh.pop %v1719
        %v1753 = vtanh.pop %v1722
        %v1754 = vtanh.pop %v1725
        %v1755 = vtanh.pop %v1728
        %v1756 = vtanh.pop %v1731
        %v1757 = vtanh.pop %v1734
        %v1758 = vtanh.pop %v1737
        %v1759 = vtanh.pop %v1740
        %v1760 = vtanh.pop %v1743
        %v1761 = vmul.f32 %v1745, %v1549
        %v1762 = vmul.f32 %v1746, %v1550
        %v1763 = vmul.f32 %v1747, %v1551
        %v1764 = vmul.f32 %v1748, %v1552
        %v1765 = vmul.f32 %v1749, %v1553
        %v1766 = vmul.f32 %v1750, %v1554
        %v1767 = vmul.f32 %v1751, %v1555
        %v1768 = vmul.f32 %v1752, %v1556
        %v1769 = vmul.f32 %v1753, %v1557
        %v1770 = vmul.f32 %v1754, %v1558
        %v1771 = vmul.f32 %v1755, %v1559
        %v1772 = vmul.f32 %v1756, %v1560
        %v1773 = vmul.f32 %v1757, %v1561
        %v1774 = vmul.f32 %v1758, %v1562
        %v1775 = vmul.f32 %v1759, %v1563
        %v1776 = vmul.f32 %v1760, %v1564
        %s1777 = scalar_lea.vmem [#allocation8], 128
        %v1778 = vld [vmem:[%s1777] sm:$0xff]
        %v1779 = vld [vmem:[%s1777 + $0x8] sm:$0xff]
        %v1780 = vld [vmem:[%s1777 + $0x10] sm:$0xff]
        %v1781 = vld [vmem:[%s1777 + $0x18] sm:$0xff]
        %v1782 = vld [vmem:[%s1777 + $0x20] sm:$0xff]
        %v1783 = vld [vmem:[%s1777 + $0x28] sm:$0xff]
        %v1784 = vld [vmem:[%s1777 + $0x30] sm:$0xff]
        %v1785 = vld [vmem:[%s1777 + $0x38] sm:$0xff]
        %v1786 = vld [vmem:[%s1777 + $0x40] sm:$0xff]
        %v1787 = vld [vmem:[%s1777 + $0x48] sm:$0xff]
        %v1788 = vld [vmem:[%s1777 + $0x50] sm:$0xff]
        %v1789 = vld [vmem:[%s1777 + $0x58] sm:$0xff]
        %v1790 = vld [vmem:[%s1777 + $0x60] sm:$0xff]
        %v1791 = vld [vmem:[%s1777 + $0x68] sm:$0xff]
        %v1792 = vld [vmem:[%s1777 + $0x70] sm:$0xff]
        %v1793 = vld [vmem:[%s1777 + $0x78] sm:$0xff]
        %s1794 = scalar_lea.vmem %s5, 1
        %v1795 = vld [vmem:[%s1794] sm:$0x1]
        %v1797 = vperm.slane %v1795, 0
        %1799 = vmatpush.msra.mxu0 %v1793
        %1800 = vmatpush.msra.mxu0 %v1792
        %1801 = vmatpush.msra.mxu0 %v1791
        %1802 = vmatpush.msra.mxu0 %v1790
        %1803 = vmatpush.msra.mxu0 %v1789
        %1804 = vmatpush.msra.mxu0 %v1788
        %1805 = vmatpush.msra.mxu0 %v1787
        %1806 = vmatpush.msra.mxu0 %v1786
        %1807 = vmatpush.msra.mxu0 %v1785
        %1808 = vmatpush.msra.mxu0 %v1784
        %1809 = vmatpush.msra.mxu0 %v1783
        %1810 = vmatpush.msra.mxu0 %v1782
        %1811 = vmatpush.msra.mxu0 %v1781
        %1812 = vmatpush.msra.mxu0 %v1780
        %1813 = vmatpush.msra.mxu0 %v1779
        %1814 = vmatpush.msra.mxu0 %v1778
        %1815 = vmatmul.f32.gmra.mxu0 %v1761
        %v1816 = vpop.f32.mrf.mxu0
        %v1817 = vadd.f32 %v1797, %v1816
        %1818 = vmatmul.f32.gmra.mxu0 %v1762
        %v1819 = vpop.f32.mrf.mxu0
        %v1820 = vadd.f32 %v1797, %v1819
        %1821 = vmatmul.f32.gmra.mxu0 %v1763
        %v1822 = vpop.f32.mrf.mxu0
        %v1823 = vadd.f32 %v1797, %v1822
        %1824 = vmatmul.f32.gmra.mxu0 %v1764
        %v1825 = vpop.f32.mrf.mxu0
        %v1826 = vadd.f32 %v1797, %v1825
        %1827 = vmatmul.f32.gmra.mxu0 %v1765
        %v1828 = vpop.f32.mrf.mxu0
        %v1829 = vadd.f32 %v1797, %v1828
        %1830 = vmatmul.f32.gmra.mxu0 %v1766
        %v1831 = vpop.f32.mrf.mxu0
        %v1832 = vadd.f32 %v1797, %v1831
        %1833 = vmatmul.f32.gmra.mxu0 %v1767
        %v1834 = vpop.f32.mrf.mxu0
        %v1835 = vadd.f32 %v1797, %v1834
        %1836 = vmatmul.f32.gmra.mxu0 %v1768
        %v1837 = vpop.f32.mrf.mxu0
        %v1838 = vadd.f32 %v1797, %v1837
        %1839 = vmatmul.f32.gmra.mxu0 %v1769
        %v1840 = vpop.f32.mrf.mxu0
        %v1841 = vadd.f32 %v1797, %v1840
        %1842 = vmatmul.f32.gmra.mxu0 %v1770
        %v1843 = vpop.f32.mrf.mxu0
        %v1844 = vadd.f32 %v1797, %v1843
        %1845 = vmatmul.f32.gmra.mxu0 %v1771
        %v1846 = vpop.f32.mrf.mxu0
        %v1847 = vadd.f32 %v1797, %v1846
        %1848 = vmatmul.f32.gmra.mxu0 %v1772
        %v1849 = vpop.f32.mrf.mxu0
        %v1850 = vadd.f32 %v1797, %v1849
        %1851 = vmatmul.f32.gmra.mxu0 %v1773
        %v1852 = vpop.f32.mrf.mxu0
        %v1853 = vadd.f32 %v1797, %v1852
        %1854 = vmatmul.f32.gmra.mxu0 %v1774
        %v1855 = vpop.f32.mrf.mxu0
        %v1856 = vadd.f32 %v1797, %v1855
        %1857 = vmatmul.f32.gmra.mxu0 %v1775
        %v1858 = vpop.f32.mrf.mxu0
        %v1859 = vadd.f32 %v1797, %v1858
        %1860 = vmatmul.f32.gmra.mxu0 %v1776
        %v1861 = vpop.f32.mrf.mxu0
        %v1862 = vadd.f32 %v1797, %v1861
        %1863 = vdwg.mxu0
        %v1864 = vmul.f32 %v340, %v1817
        %v1865 = vmul.f32 %v341, %v1820
        %v1866 = vmul.f32 %v342, %v1823
        %v1867 = vmul.f32 %v343, %v1826
        %v1868 = vmul.f32 %v344, %v1829
        %v1869 = vmul.f32 %v345, %v1832
        %v1870 = vmul.f32 %v346, %v1835
        %v1871 = vmul.f32 %v347, %v1838
        %v1872 = vmul.f32 %v348, %v1841
        %v1873 = vmul.f32 %v349, %v1844
        %v1874 = vmul.f32 %v350, %v1847
        %v1875 = vmul.f32 %v351, %v1850
        %v1876 = vmul.f32 %v352, %v1853
        %v1877 = vmul.f32 %v353, %v1856
        %v1878 = vmul.f32 %v354, %v1859
        %v1879 = vmul.f32 %v355, %v1862
        %v1880 = vadd.f32 %v1116, %v1864
        %v1881 = vadd.f32 %v1117, %v1865
        %v1882 = vadd.f32 %v1118, %v1866
        %v1883 = vadd.f32 %v1119, %v1867
        %v1884 = vadd.f32 %v1120, %v1868
        %v1885 = vadd.f32 %v1121, %v1869
        %v1886 = vadd.f32 %v1122, %v1870
        %v1887 = vadd.f32 %v1123, %v1871
        %v1888 = vadd.f32 %v1124, %v1872
        %v1889 = vadd.f32 %v1125, %v1873
        %v1890 = vadd.f32 %v1126, %v1874
        %v1891 = vadd.f32 %v1127, %v1875
        %v1892 = vadd.f32 %v1128, %v1876
        %v1893 = vadd.f32 %v1129, %v1877
        %v1894 = vadd.f32 %v1130, %v1878
        %v1895 = vadd.f32 %v1131, %v1879
        %1896 = vst [vmem:[%s337] sm:$0xff] %v1880
        %1897 = vst [vmem:[%s337 + $0x8] sm:$0xff] %v1881
        %1898 = vst [vmem:[%s337 + $0x10] sm:$0xff] %v1882
        %1899 = vst [vmem:[%s337 + $0x18] sm:$0xff] %v1883
        %1900 = vst [vmem:[%s337 + $0x20] sm:$0xff] %v1884
        %1901 = vst [vmem:[%s337 + $0x28] sm:$0xff] %v1885
        %1902 = vst [vmem:[%s337 + $0x30] sm:$0xff] %v1886
        %1903 = vst [vmem:[%s337 + $0x38] sm:$0xff] %v1887
        %1904 = vst [vmem:[%s337 + $0x40] sm:$0xff] %v1888
        %1905 = vst [vmem:[%s337 + $0x48] sm:$0xff] %v1889
        %1906 = vst [vmem:[%s337 + $0x50] sm:$0xff] %v1890
        %1907 = vst [vmem:[%s337 + $0x58] sm:$0xff] %v1891
        %1908 = vst [vmem:[%s337 + $0x60] sm:$0xff] %v1892
        %1909 = vst [vmem:[%s337 + $0x68] sm:$0xff] %v1893
        %1910 = vst [vmem:[%s337 + $0x70] sm:$0xff] %v1894
        %1911 = vst [vmem:[%s337 + $0x78] sm:$0xff] %v1895
        %s1912 = sand.u32 %s164, 1
        %s1913 = scalar_lea.sflag [#allocation4], %s1912
        %s1914 = sand.u32 %s164, 1
        %s1915 = smul.addr %s1914, 128
        %s1916 = scalar_lea.vmem [#allocation11], %s1915
        // Predicated region
        $region65: #{tpu_custom_call.1} parent=43 // pred_check
          %p1917 = pneg %p174
        $region66: #{tpu_custom_call.1} parent=43 // pred_check_branch
          %1919 = sbr.rel (%p1917) target = $region68
        $region67: #{tpu_custom_call.1} parent=43 // pred_region
          %s1920 = smul.u32 16, %s25
          %1922 = vsyncadd %s1913, 0
          %s1923 = smul.addr %s1920, 8
          %s1924 = scalar_lea.hbm %s6, %s1923
          %s1925 = sshll.u32 %s1916, 4
          %s1926 = int_to_ptr.vmem [resolvable:$true] %s1925
          %s1927 = sshll.u32 %s1924, 4
          %s1928 = int_to_ptr.hbm [resolvable:$true] %s1927
          %1933 = dma.vmem_to_hbm [thread:$0]  %s1926, 2048, %s1928, %s1913, 128, 128, 8
        $region68: #{tpu_custom_call.1} parent=43 // pred_fallthru
          _
      $region44: #{tpu_custom_call.1} parent=5 // pred_fallthru
        _
      %p1934 = scmp.le.s32.totalorder 2, %s20
      // Predicated region
      $region69: #{tpu_custom_call.1} parent=5 // pred_check
        %p1935 = pneg %p1934
      $region70: #{tpu_custom_call.1} parent=5 // pred_check_branch
        %1937 = sbr.rel (%p1935) target = $region72
      $region71: #{tpu_custom_call.1} parent=5 // pred_region
        %s1938 = ssub.s32 %s20, 2
        // Predicated region
        $region73: #{tpu_custom_call.1} parent=71 // pred_check
          %p1939 = pneg %p180
        $region74: #{tpu_custom_call.1} parent=71 // pred_check_branch
          %1941 = sbr.rel (%p1939) target = $region76
        $region75: #{tpu_custom_call.1} parent=71 // pred_region
          %s1942 = sand.u32 %s165, 1
          %s1943 = scalar_lea.sflag [#allocation4], %s1942
          %s1944 = sand.u32 %s165, 1
          %s1945 = smul.addr %s1944, 128
          %s1946 = scalar_lea.vmem [#allocation11], %s1945
          %1948 = dma.done %s1943, 2048
        $region76: #{tpu_custom_call.1} parent=71 // pred_fallthru
          _
      $region72: #{tpu_custom_call.1} parent=5 // pred_fallthru
        _
    $region6: #{tpu_custom_call.1} parent=1 // loop_footer
      %s24 = sadd.s32 1, %s20
    $region7: #{tpu_custom_call.1} parent=1 // loop_footer_branch
      %19 = sbr.rel target = $region3
    $region8: #{tpu_custom_call.1} parent=1 // loop_exit
      _
    %1949 = vsyncpa [#allocation3], 1
    %s1950 = scalar_lea.sflag [#allocation3], 1
    %1951 = vsyncpa %s1950, 1
    %1952 = vsyncpa [#allocation6], 1
    %1953 = vsyncpa [#allocation9], 1
    %1954 = vsyncpa [#allocation4], 1
    %s1955 = scalar_lea.sflag [#allocation4], 1
    %1956 = vsyncpa %s1955, 1

</llo_original>
